<compile_context>
chip_gen: v5e
topology: v5e:2x2
jax: 0.10.0
libtpu: 0.0.40
codegen_flags: <defaults>
</compile_context>

<pallas_src>
import math
import functools

import jax
import jax.numpy as jnp
from jax.experimental import pallas as pl
from jax.experimental.pallas import tpu as pltpu

EPS = 1e-6


def _layernorm(x, gamma, beta, d):
    # matches: a_2 * (x - mean) / (x.std(-1, unbiased) + eps) + b_2
    mean = jnp.mean(x, axis=-1, keepdims=True)
    diff = x - mean
    var = jnp.sum(diff * diff, axis=-1, keepdims=True) * (1.0 / (d - 1))
    std = jnp.sqrt(var)
    inv = pl.reciprocal(std + EPS, approx=True)        # EUP slot, frees VALU
    return gamma * (diff * inv) + beta


def cross_att_kernel(q_ref, k_ref,
                     wq_ref, wkv_ref, wo_ref, w1_ref, w2_ref,
                     vecs_ref, b1_ref,
                     o_ref, *, num_heads):
    q = q_ref[0]                      # (TM, D) f32 rows of one batch element
    k = k_ref[0]                      # (Lk, D) f32
    TM, D = q.shape
    Lk = k.shape[0]
    dk = D // num_heads
    scale = 1.0 / math.sqrt(dk)

    # Packed small vectors: [bq, bk, bv, bo, g1, be1, g2, be2, b2] stacked on sublanes.
    bq, bk, bv, bo = vecs_ref[0:1, :], vecs_ref[1:2, :], vecs_ref[2:3, :], vecs_ref[3:4, :]
    g1, be1 = vecs_ref[4:5, :], vecs_ref[5:6, :]
    g2, be2 = vecs_ref[6:7, :], vecs_ref[7:8, :]
    b2 = vecs_ref[8:9, :]

    # ---- sublayer[0]: x = q + self_attn(LN(q), k, k) ----
    qn = _layernorm(q, g1, be1, D)

    # Projections: bf16 operands on the MXU, f32 accumulation. K/V weights are fused
    # into one (D, 2D) matmul (wider N for the MXU).
    Q = jnp.dot(qn.astype(jnp.bfloat16), wq_ref[...],
                preferred_element_type=jnp.float32) + bq
    KV = jnp.dot(k.astype(jnp.bfloat16), wkv_ref[...],
                 preferred_element_type=jnp.float32)
    K = KV[:, :D] + bk
    V = KV[:, D:] + bv

    # Head split: one reshape+transpose relayout per tensor (no per-head Python loop).
    Qh = Q.reshape(TM, num_heads, dk).transpose(1, 0, 2).astype(jnp.bfloat16)   # (H, TM, dk)
    Kh = K.reshape(Lk, num_heads, dk).transpose(1, 0, 2).astype(jnp.bfloat16)   # (H, Lk, dk)
    Vh = V.reshape(Lk, num_heads, dk).transpose(1, 0, 2).astype(jnp.bfloat16)   # (H, Lk, dk)

    # One batched contraction over all heads.
    s = jnp.einsum('hqd,hkd->hqk', Qh, Kh,
                   preferred_element_type=jnp.float32) * scale                  # (H, TM, Lk)
    m = jnp.max(s, axis=-1, keepdims=True)
    e = jnp.exp(s - m)
    p = e * pl.reciprocal(jnp.sum(e, axis=-1, keepdims=True), approx=True)

    ctx_h = jnp.einsum('hqk,hkd->hqd', p.astype(jnp.bfloat16), Vh,
                       preferred_element_type=jnp.float32)                      # (H, TM, dk)
    ctx = ctx_h.transpose(1, 0, 2).reshape(TM, D)                               # merge heads

    attn = jnp.dot(ctx.astype(jnp.bfloat16), wo_ref[...],
                   preferred_element_type=jnp.float32) + bo
    x = q + attn                                                                # dropout = id

    # ---- sublayer[1]: x = x + feed_forward(LN(x)) ----
    xn = _layernorm(x, g2, be2, D)
    h1 = jnp.maximum(
        jnp.dot(xn.astype(jnp.bfloat16), w1_ref[...],
                preferred_element_type=jnp.float32) + b1_ref[...], 0.0)
    ff = jnp.dot(h1.astype(jnp.bfloat16), w2_ref[...],
                 preferred_element_type=jnp.float32) + b2

    o_ref[0] = (x + ff).astype(o_ref.dtype)


def prepare_cross_att_params(params):
    """One-time parameter preparation (hoisted out of the per-call path).

    Fuses the K/V projection weights into one (D, 2D) matrix, casts all MXU weights
    to bf16, and packs the nine (1, D) bias / LayerNorm vectors into a single (9, D)
    array.  Call once and reuse the result for every forward pass.
    """
    wkv = jnp.concatenate([params["wk"], params["wv"]], axis=1)
    vecs = jnp.concatenate(
        [params["bq"], params["bk"], params["bv"], params["bo"],
         params["g1"], params["be1"], params["g2"], params["be2"],
         params["b2"]], axis=0)                      # (9, D) f32
    return {
        "wq": params["wq"].astype(jnp.bfloat16),
        "wkv": wkv.astype(jnp.bfloat16),
        "wo": params["wo"].astype(jnp.bfloat16),
        "w1": params["w1"].astype(jnp.bfloat16),
        "w2": params["w2"].astype(jnp.bfloat16),
        "vecs": vecs,
        "b1": params["b1"],                          # (1, d_ff) f32
    }


def _pick_row_tile(Lq):
    # Real sequence lengths: 256 (v6e/v7x MXU rows) or 128; tiny demo: whole Lq.
    for tm in (256, 128):
        if Lq % tm == 0:
            return tm
    return Lq


def cross_att_layer(q, k, prepared, num_heads, v=None):
    """Matches PyTorch CrossAttLayer.forward(q, k, v): the module attends (LN(q), k, k),
    so `v` is accepted for API parity but ignored (as in the reference module)."""
    del v
    B, Lq, D = q.shape
    _, Lk, _ = k.shape
    d_ff = prepared["b1"].shape[1]

    TM = _pick_row_tile(Lq)
    assert Lq % TM == 0 and (TM % 8 == 0 or TM == Lq)
    n_m = Lq // TM

    in_specs = [
        pl.BlockSpec((1, TM, D), lambda b, m: (b, m, 0)),     # q rows of one batch elem
        pl.BlockSpec((1, Lk, D), lambda b, m: (b, 0, 0)),     # full k of that batch elem
        pl.BlockSpec((D, D),     lambda b, m: (0, 0)),        # Wq   (constant -> resident)
        pl.BlockSpec((D, 2 * D), lambda b, m: (0, 0)),        # Wkv  (fused)
        pl.BlockSpec((D, D),     lambda b, m: (0, 0)),        # Wo
        pl.BlockSpec((D, d_ff),  lambda b, m: (0, 0)),        # FFN W1
        pl.BlockSpec((d_ff, D),  lambda b, m: (0, 0)),        # FFN W2
        pl.BlockSpec((9, D),     lambda b, m: (0, 0)),        # packed biases + LN params
        pl.BlockSpec((1, d_ff),  lambda b, m: (0, 0)),        # FFN b1
    ]

    kernel = functools.partial(cross_att_kernel, num_heads=num_heads)

    # Rough cost hint so XLA can schedule neighbouring ops around the custom call.
    flops = 2 * B * (Lq * D * D            # Q projection
                     + Lk * D * 2 * D      # fused KV projection
                     + 2 * Lq * Lk * D     # scores + PV
                     + Lq * D * D          # output projection
                     + 2 * Lq * D * d_ff)  # FFN
    transcendentals = B * num_heads * Lq * Lk + 4 * B * Lq
    bytes_accessed = (4 * (2 * B * Lq * D + B * Lk * D)                       # q, out, k (f32)
                      + 2 * (D * D + 2 * D * D + D * D + 2 * D * d_ff)        # bf16 weights
                      + 4 * (9 * D + d_ff))                                   # packed vectors

    # Grid over (batch, q-row tiles); every step is independent -> both axes parallel
    # (megacore sharding on v7x, plain loop on v5e/v6e).
    return pl.pallas_call(
        kernel,
        out_shape=jax.ShapeDtypeStruct((B, Lq, D), q.dtype),
        grid=(B, n_m),
        in_specs=in_specs,
        out_specs=pl.BlockSpec((1, TM, D), lambda b, m: (b, m, 0)),
        compiler_params=pltpu.CompilerParams(
            dimension_semantics=("parallel", "parallel"),
            vmem_limit_bytes=48 * 1024 * 1024),       # stays under v7x's 64 MiB physical
        cost_estimate=pl.CostEstimate(
            flops=flops, transcendentals=transcendentals, bytes_accessed=bytes_accessed),
    )(q, k,
      prepared["wq"], prepared["wkv"], prepared["wo"],
      prepared["w1"], prepared["w2"],
      prepared["vecs"], prepared["b1"])


def cross_att_layer_ref(q, k, params, num_heads):
    """Pure-JAX f32 reference (identical math) for validation."""
    B, Lq, D = q.shape
    dk = D // num_heads

    def ln(x, g, b):
        mean = jnp.mean(x, axis=-1, keepdims=True)
        diff = x - mean
        std = jnp.sqrt(jnp.sum(diff * diff, axis=-1, keepdims=True) / (D - 1))
        return g * diff / (std + EPS) + b

    qn = ln(q, params["g1"], params["be1"])
    Q = qn @ params["wq"] + params["bq"]
    K = k @ params["wk"] + params["bk"]
    V = k @ params["wv"] + params["bv"]
    Qh = Q.reshape(B, Lq, num_heads, dk).transpose(0, 2, 1, 3)
    Kh = K.reshape(B, -1, num_heads, dk).transpose(0, 2, 1, 3)
    Vh = V.reshape(B, -1, num_heads, dk).transpose(0, 2, 1, 3)
    s = jnp.einsum("bhqd,bhkd->bhqk", Qh, Kh) / math.sqrt(dk)
    p = jax.nn.softmax(s, axis=-1)
    a = jnp.einsum("bhqk,bhkd->bhqd", p, Vh).transpose(0, 2, 1, 3).reshape(B, Lq, D)
    x = q + (a @ params["wo"] + params["bo"])
    xn = ln(x, params["g2"], params["be2"])
    ff = jnp.maximum(xn @ params["w1"] + params["b1"], 0.0) @ params["w2"] + params["b2"]
    return x + ff


def init_params(key, d_model, d_ff):
    ks = jax.random.split(key, 10)
    s = 0.02
    return {
        "wq": jax.random.normal(ks[0], (d_model, d_model), jnp.float32) * s,
        "bq": jax.random.normal(ks[1], (1, d_model), jnp.float32) * s,
        "wk": jax.random.normal(ks[2], (d_model, d_model), jnp.float32) * s,
        "bk": jnp.zeros((1, d_model), jnp.float32),
        "wv": jax.random.normal(ks[3], (d_model, d_model), jnp.float32) * s,
        "bv": jnp.zeros((1, d_model), jnp.float32),
        "wo": jax.random.normal(ks[4], (d_model, d_model), jnp.float32) * s,
        "bo": jax.random.normal(ks[5], (1, d_model), jnp.float32) * s,
        "g1": jnp.ones((1, d_model), jnp.float32),
        "be1": jnp.zeros((1, d_model), jnp.float32),
        "w1": jax.random.normal(ks[6], (d_model, d_ff), jnp.float32) * s,
        "b1": jax.random.normal(ks[7], (1, d_ff), jnp.float32) * s,
        "w2": jax.random.normal(ks[8], (d_ff, d_model), jnp.float32) * s,
        "b2": jax.random.normal(ks[9], (1, d_model), jnp.float32) * s,
        "g2": jnp.ones((1, d_model), jnp.float32),
        "be2": jnp.zeros((1, d_model), jnp.float32),
    }


if __name__ == "__main__":
    # Small but lane-dense shapes: d_model = 128 (full 128-lane loads/stores), 4 heads.
    B, Lq, Lk, D, H, DFF = 2, 8, 8, 128, 4, 256

    key = jax.random.PRNGKey(0)
    kq, kk, kv, kp = jax.random.split(key, 4)
    q = jax.random.normal(kq, (B, Lq, D), jnp.float32)
    k = jax.random.normal(kk, (B, Lk, D), jnp.float32)
    v = jax.random.normal(kv, (B, Lk, D), jnp.float32)  # ignored: module attends (LN(q), k, k)
    params = init_params(kp, D, DFF)

    # One-time weight preparation (fused KV, bf16 casts, packed small vectors).
    prepared = prepare_cross_att_params(params)
    prepared = jax.tree_util.tree_map(jax.block_until_ready, prepared)

    out = cross_att_layer(q, k, prepared, num_heads=H, v=v)
    out = jax.block_until_ready(out)

    ref = cross_att_layer_ref(q, k, params, num_heads=H)
    # bf16 MXU operands (f32 accumulation) + approx reciprocals -> ~1e-3 drift vs f32 ref.
    if not jnp.allclose(out, ref, atol=2e-2, rtol=2e-2):
        err = jnp.max(jnp.abs(out - ref))
        raise AssertionError(f"Pallas kernel does not match reference (max abs err {err})")

    print("KERNEL_OK")
</pallas_src>

<mosaic_0001>
module attributes {stable_mosaic.version = 11 : i64} {
  func.func @cross_att_kernel(%arg0: i32, %arg1: i32, %arg2: memref<1x8x128xf32, #tpu.memory_space<vmem>>, %arg3: memref<1x8x128xf32, #tpu.memory_space<vmem>>, %arg4: memref<128x128xbf16, #tpu.memory_space<vmem>>, %arg5: memref<128x256xbf16, #tpu.memory_space<vmem>>, %arg6: memref<128x128xbf16, #tpu.memory_space<vmem>>, %arg7: memref<128x256xbf16, #tpu.memory_space<vmem>>, %arg8: memref<256x128xbf16, #tpu.memory_space<vmem>>, %arg9: memref<9x128xf32, #tpu.memory_space<vmem>>, %arg10: memref<1x256xf32, #tpu.memory_space<vmem>>, %arg11: memref<1x8x128xf32, #tpu.memory_space<vmem>>) attributes {dimension_semantics = [#tpu.dimension_semantics<parallel>, #tpu.dimension_semantics<parallel>], iteration_bounds = array<i64: 2, 1>, scalar_prefetch = 0 : i64, scratch_operands = 0 : i64, tpu.core_type = #tpu.core_type<tc>, window_params = [{transform_indices = @transform_0, window_bounds = array<i64: 1, 8, 128>}, {transform_indices = @transform_1, window_bounds = array<i64: 1, 8, 128>}, {pipeline_mode = #tpu.pipeline_mode<synchronous>, transform_indices = @transform_2, window_bounds = array<i64: 128, 128>}, {pipeline_mode = #tpu.pipeline_mode<synchronous>, transform_indices = @transform_3, window_bounds = array<i64: 128, 256>}, {pipeline_mode = #tpu.pipeline_mode<synchronous>, transform_indices = @transform_4, window_bounds = array<i64: 128, 128>}, {pipeline_mode = #tpu.pipeline_mode<synchronous>, transform_indices = @transform_5, window_bounds = array<i64: 128, 256>}, {pipeline_mode = #tpu.pipeline_mode<synchronous>, transform_indices = @transform_6, window_bounds = array<i64: 256, 128>}, {pipeline_mode = #tpu.pipeline_mode<synchronous>, transform_indices = @transform_7, window_bounds = array<i64: 9, 128>}, {pipeline_mode = #tpu.pipeline_mode<synchronous>, transform_indices = @transform_8, window_bounds = array<i64: 1, 256>}, {transform_indices = @transform_9, window_bounds = array<i64: 1, 8, 128>}]} {
    %c0 = arith.constant 0 : index
    %c0_0 = arith.constant 0 : index
    %c0_1 = arith.constant 0 : index
    %0 = vector.load %arg2[%c0, %c0_0, %c0_1] : memref<1x8x128xf32, #tpu.memory_space<vmem>>, vector<1x8x128xf32>
    %1 = vector.shape_cast %0 : vector<1x8x128xf32> to vector<8x128xf32>
    %c0_2 = arith.constant 0 : index
    %c0_3 = arith.constant 0 : index
    %c0_4 = arith.constant 0 : index
    %2 = vector.load %arg3[%c0_2, %c0_3, %c0_4] : memref<1x8x128xf32, #tpu.memory_space<vmem>>, vector<1x8x128xf32>
    %3 = vector.shape_cast %2 : vector<1x8x128xf32> to vector<8x128xf32>
    %c0_5 = arith.constant 0 : index
    %c0_6 = arith.constant 0 : index
    %4 = vector.load %arg9[%c0_5, %c0_6] : memref<9x128xf32, #tpu.memory_space<vmem>>, vector<1x128xf32>
    %c1 = arith.constant 1 : index
    %c0_7 = arith.constant 0 : index
    %5 = vector.load %arg9[%c1, %c0_7] : memref<9x128xf32, #tpu.memory_space<vmem>>, vector<1x128xf32>
    %c2 = arith.constant 2 : index
    %c0_8 = arith.constant 0 : index
    %6 = vector.load %arg9[%c2, %c0_8] : memref<9x128xf32, #tpu.memory_space<vmem>>, vector<1x128xf32>
    %c3 = arith.constant 3 : index
    %c0_9 = arith.constant 0 : index
    %7 = vector.load %arg9[%c3, %c0_9] : memref<9x128xf32, #tpu.memory_space<vmem>>, vector<1x128xf32>
    %c4 = arith.constant 4 : index
    %c0_10 = arith.constant 0 : index
    %8 = vector.load %arg9[%c4, %c0_10] : memref<9x128xf32, #tpu.memory_space<vmem>>, vector<1x128xf32>
    %c5 = arith.constant 5 : index
    %c0_11 = arith.constant 0 : index
    %9 = vector.load %arg9[%c5, %c0_11] : memref<9x128xf32, #tpu.memory_space<vmem>>, vector<1x128xf32>
    %c6 = arith.constant 6 : index
    %c0_12 = arith.constant 0 : index
    %10 = vector.load %arg9[%c6, %c0_12] : memref<9x128xf32, #tpu.memory_space<vmem>>, vector<1x128xf32>
    %c7 = arith.constant 7 : index
    %c0_13 = arith.constant 0 : index
    %11 = vector.load %arg9[%c7, %c0_13] : memref<9x128xf32, #tpu.memory_space<vmem>>, vector<1x128xf32>
    %c8 = arith.constant 8 : index
    %c0_14 = arith.constant 0 : index
    %12 = vector.load %arg9[%c8, %c0_14] : memref<9x128xf32, #tpu.memory_space<vmem>>, vector<1x128xf32>
    %cst = arith.constant dense<0.000000e+00> : vector<8xf32>
    %13 = vector.multi_reduction <add>, %1, %cst [1] : vector<8x128xf32> to vector<8xf32>
    %14 = vector.shape_cast %13 : vector<8xf32> to vector<8x1xf32>
    %cst_15 = arith.constant 1.280000e+02 : f32
    %15 = vector.broadcast %cst_15 : f32 to vector<8x1xf32>
    %16 = arith.divf %14, %15 : vector<8x1xf32>
    %17 = vector.broadcast %16 : vector<8x1xf32> to vector<8x128xf32>
    %18 = arith.subf %1, %17 : vector<8x128xf32>
    %19 = arith.mulf %18, %18 : vector<8x128xf32>
    %cst_16 = arith.constant dense<0.000000e+00> : vector<8xf32>
    %20 = vector.multi_reduction <add>, %19, %cst_16 [1] : vector<8x128xf32> to vector<8xf32>
    %21 = vector.shape_cast %20 : vector<8xf32> to vector<8x1xf32>
    %cst_17 = arith.constant 0.00787401571 : f32
    %22 = vector.broadcast %cst_17 : f32 to vector<8x1xf32>
    %23 = arith.mulf %21, %22 : vector<8x1xf32>
    %24 = math.sqrt %23 : vector<8x1xf32>
    %cst_18 = arith.constant 9.99999997E-7 : f32
    %25 = vector.broadcast %cst_18 : f32 to vector<8x1xf32>
    %26 = arith.addf %24, %25 : vector<8x1xf32>
    %27 = tpu.reciprocal %26 {approx = true} : vector<8x1xf32> -> vector<8x1xf32>
    %28 = vector.broadcast %27 : vector<8x1xf32> to vector<8x128xf32>
    %29 = arith.mulf %18, %28 : vector<8x128xf32>
    %30 = vector.broadcast %8 : vector<1x128xf32> to vector<8x128xf32>
    %31 = arith.mulf %30, %29 : vector<8x128xf32>
    %32 = vector.broadcast %9 : vector<1x128xf32> to vector<8x128xf32>
    %33 = arith.addf %31, %32 : vector<8x128xf32>
    %34 = arith.truncf %33 : vector<8x128xf32> to vector<8x128xbf16>
    %c0_19 = arith.constant 0 : index
    %c0_20 = arith.constant 0 : index
    %35 = vector.load %arg4[%c0_19, %c0_20] : memref<128x128xbf16, #tpu.memory_space<vmem>>, vector<128x128xbf16>
    %cst_21 = arith.constant dense<0.000000e+00> : vector<8x128xf32>
    %36 = tpu.matmul %34, %35, %cst_21 {dimension_numbers = #tpu.dot_dimension_numbers<[1], [0], [0], [1], [0, 0, 1, 1], [], []>} : vector<8x128xbf16>, vector<128x128xbf16>, vector<8x128xf32> -> vector<8x128xf32>
    %37 = vector.broadcast %4 : vector<1x128xf32> to vector<8x128xf32>
    %38 = arith.addf %36, %37 : vector<8x128xf32>
    %39 = arith.truncf %3 : vector<8x128xf32> to vector<8x128xbf16>
    %c0_22 = arith.constant 0 : index
    %c0_23 = arith.constant 0 : index
    %40 = vector.load %arg5[%c0_22, %c0_23] : memref<128x256xbf16, #tpu.memory_space<vmem>>, vector<128x256xbf16>
    %cst_24 = arith.constant dense<0.000000e+00> : vector<8x256xf32>
    %41 = tpu.matmul %39, %40, %cst_24 {dimension_numbers = #tpu.dot_dimension_numbers<[1], [0], [0], [1], [0, 0, 1, 1], [], []>} : vector<8x128xbf16>, vector<128x256xbf16>, vector<8x256xf32> -> vector<8x256xf32>
    %42 = vector.extract_strided_slice %41 {offsets = [0, 0], sizes = [8, 128], strides = [1, 1]} : vector<8x256xf32> to vector<8x128xf32>
    %43 = vector.broadcast %5 : vector<1x128xf32> to vector<8x128xf32>
    %44 = arith.addf %42, %43 : vector<8x128xf32>
    %45 = vector.extract_strided_slice %41 {offsets = [0, 128], sizes = [8, 128], strides = [1, 1]} : vector<8x256xf32> to vector<8x128xf32>
    %46 = vector.broadcast %6 : vector<1x128xf32> to vector<8x128xf32>
    %47 = arith.addf %45, %46 : vector<8x128xf32>
    %48 = vector.shape_cast %38 : vector<8x128xf32> to vector<8x4x32xf32>
    %49 = tpu.transpose %48, [1, 0, 2] : vector<8x4x32xf32> -> vector<4x8x32xf32>
    %50 = arith.truncf %49 : vector<4x8x32xf32> to vector<4x8x32xbf16>
    %51 = vector.shape_cast %44 : vector<8x128xf32> to vector<8x4x32xf32>
    %52 = tpu.transpose %51, [1, 0, 2] : vector<8x4x32xf32> -> vector<4x8x32xf32>
    %53 = arith.truncf %52 : vector<4x8x32xf32> to vector<4x8x32xbf16>
    %54 = vector.shape_cast %47 : vector<8x128xf32> to vector<8x4x32xf32>
    %55 = tpu.transpose %54, [1, 0, 2] : vector<8x4x32xf32> -> vector<4x8x32xf32>
    %56 = arith.truncf %55 : vector<4x8x32xf32> to vector<4x8x32xbf16>
    "tpu.trace_start"() <{level = 10 : i32, message = "hqd,hkd->hqk"}> : () -> ()
    %cst_25 = arith.constant dense<0.000000e+00> : vector<4x8x8xf32>
    %57 = tpu.matmul %50, %53, %cst_25 {dimension_numbers = #tpu.dot_dimension_numbers<[2], [2], [1], [1], [0, 0, 0, 1, 1, 1], [0], [0]>} : vector<4x8x32xbf16>, vector<4x8x32xbf16>, vector<4x8x8xf32> -> vector<4x8x8xf32>
    "tpu.trace_stop"() : () -> ()
    %cst_26 = arith.constant 0.176776692 : f32
    %58 = vector.broadcast %cst_26 : f32 to vector<4x8x8xf32>
    %59 = arith.mulf %57, %58 : vector<4x8x8xf32>
    %cst_27 = arith.constant dense<0xFF800000> : vector<4x8xf32>
    %60 = vector.multi_reduction <maximumf>, %59, %cst_27 [2] : vector<4x8x8xf32> to vector<4x8xf32>
    %61 = vector.shape_cast %60 : vector<4x8xf32> to vector<4x8x1xf32>
    %62 = vector.broadcast %61 : vector<4x8x1xf32> to vector<4x8x8xf32>
    %63 = arith.subf %59, %62 : vector<4x8x8xf32>
    %64 = math.exp %63 : vector<4x8x8xf32>
    %cst_28 = arith.constant dense<0.000000e+00> : vector<4x8xf32>
    %65 = vector.multi_reduction <add>, %64, %cst_28 [2] : vector<4x8x8xf32> to vector<4x8xf32>
    %66 = vector.shape_cast %65 : vector<4x8xf32> to vector<4x8x1xf32>
    %67 = tpu.reciprocal %66 {approx = true} : vector<4x8x1xf32> -> vector<4x8x1xf32>
    %68 = vector.broadcast %67 : vector<4x8x1xf32> to vector<4x8x8xf32>
    %69 = arith.mulf %64, %68 : vector<4x8x8xf32>
    %70 = arith.truncf %69 : vector<4x8x8xf32> to vector<4x8x8xbf16>
    "tpu.trace_start"() <{level = 10 : i32, message = "hqk,hkd->hqd"}> : () -> ()
    %cst_29 = arith.constant dense<0.000000e+00> : vector<4x8x32xf32>
    %71 = tpu.matmul %70, %56, %cst_29 {dimension_numbers = #tpu.dot_dimension_numbers<[2], [1], [1], [2], [0, 0, 0, 1, 1, 2], [0], [0]>} : vector<4x8x8xbf16>, vector<4x8x32xbf16>, vector<4x8x32xf32> -> vector<4x8x32xf32>
    "tpu.trace_stop"() : () -> ()
    %72 = tpu.transpose %71, [1, 0, 2] : vector<4x8x32xf32> -> vector<8x4x32xf32>
    %73 = vector.shape_cast %72 : vector<8x4x32xf32> to vector<8x128xf32>
    %74 = arith.truncf %73 : vector<8x128xf32> to vector<8x128xbf16>
    %c0_30 = arith.constant 0 : index
    %c0_31 = arith.constant 0 : index
    %75 = vector.load %arg6[%c0_30, %c0_31] : memref<128x128xbf16, #tpu.memory_space<vmem>>, vector<128x128xbf16>
    %cst_32 = arith.constant dense<0.000000e+00> : vector<8x128xf32>
    %76 = tpu.matmul %74, %75, %cst_32 {dimension_numbers = #tpu.dot_dimension_numbers<[1], [0], [0], [1], [0, 0, 1, 1], [], []>} : vector<8x128xbf16>, vector<128x128xbf16>, vector<8x128xf32> -> vector<8x128xf32>
    %77 = vector.broadcast %7 : vector<1x128xf32> to vector<8x128xf32>
    %78 = arith.addf %76, %77 : vector<8x128xf32>
    %79 = arith.addf %1, %78 : vector<8x128xf32>
    %cst_33 = arith.constant dense<0.000000e+00> : vector<8xf32>
    %80 = vector.multi_reduction <add>, %79, %cst_33 [1] : vector<8x128xf32> to vector<8xf32>
    %81 = vector.shape_cast %80 : vector<8xf32> to vector<8x1xf32>
    %cst_34 = arith.constant 1.280000e+02 : f32
    %82 = vector.broadcast %cst_34 : f32 to vector<8x1xf32>
    %83 = arith.divf %81, %82 : vector<8x1xf32>
    %84 = vector.broadcast %83 : vector<8x1xf32> to vector<8x128xf32>
    %85 = arith.subf %79, %84 : vector<8x128xf32>
    %86 = arith.mulf %85, %85 : vector<8x128xf32>
    %cst_35 = arith.constant dense<0.000000e+00> : vector<8xf32>
    %87 = vector.multi_reduction <add>, %86, %cst_35 [1] : vector<8x128xf32> to vector<8xf32>
    %88 = vector.shape_cast %87 : vector<8xf32> to vector<8x1xf32>
    %cst_36 = arith.constant 0.00787401571 : f32
    %89 = vector.broadcast %cst_36 : f32 to vector<8x1xf32>
    %90 = arith.mulf %88, %89 : vector<8x1xf32>
    %91 = math.sqrt %90 : vector<8x1xf32>
    %cst_37 = arith.constant 9.99999997E-7 : f32
    %92 = vector.broadcast %cst_37 : f32 to vector<8x1xf32>
    %93 = arith.addf %91, %92 : vector<8x1xf32>
    %94 = tpu.reciprocal %93 {approx = true} : vector<8x1xf32> -> vector<8x1xf32>
    %95 = vector.broadcast %94 : vector<8x1xf32> to vector<8x128xf32>
    %96 = arith.mulf %85, %95 : vector<8x128xf32>
    %97 = vector.broadcast %10 : vector<1x128xf32> to vector<8x128xf32>
    %98 = arith.mulf %97, %96 : vector<8x128xf32>
    %99 = vector.broadcast %11 : vector<1x128xf32> to vector<8x128xf32>
    %100 = arith.addf %98, %99 : vector<8x128xf32>
    %101 = arith.truncf %100 : vector<8x128xf32> to vector<8x128xbf16>
    %c0_38 = arith.constant 0 : index
    %c0_39 = arith.constant 0 : index
    %102 = vector.load %arg7[%c0_38, %c0_39] : memref<128x256xbf16, #tpu.memory_space<vmem>>, vector<128x256xbf16>
    %cst_40 = arith.constant dense<0.000000e+00> : vector<8x256xf32>
    %103 = tpu.matmul %101, %102, %cst_40 {dimension_numbers = #tpu.dot_dimension_numbers<[1], [0], [0], [1], [0, 0, 1, 1], [], []>} : vector<8x128xbf16>, vector<128x256xbf16>, vector<8x256xf32> -> vector<8x256xf32>
    %c0_41 = arith.constant 0 : index
    %c0_42 = arith.constant 0 : index
    %104 = vector.load %arg10[%c0_41, %c0_42] : memref<1x256xf32, #tpu.memory_space<vmem>>, vector<1x256xf32>
    %105 = vector.broadcast %104 : vector<1x256xf32> to vector<8x256xf32>
    %106 = arith.addf %103, %105 : vector<8x256xf32>
    %cst_43 = arith.constant 0.000000e+00 : f32
    %107 = vector.broadcast %cst_43 : f32 to vector<8x256xf32>
    %108 = arith.maximumf %106, %107 : vector<8x256xf32>
    %109 = arith.truncf %108 : vector<8x256xf32> to vector<8x256xbf16>
    %c0_44 = arith.constant 0 : index
    %c0_45 = arith.constant 0 : index
    %110 = vector.load %arg8[%c0_44, %c0_45] : memref<256x128xbf16, #tpu.memory_space<vmem>>, vector<256x128xbf16>
    %cst_46 = arith.constant dense<0.000000e+00> : vector<8x128xf32>
    %111 = tpu.matmul %109, %110, %cst_46 {dimension_numbers = #tpu.dot_dimension_numbers<[1], [0], [0], [1], [0, 0, 1, 1], [], []>} : vector<8x256xbf16>, vector<256x128xbf16>, vector<8x128xf32> -> vector<8x128xf32>
    %112 = vector.broadcast %12 : vector<1x128xf32> to vector<8x128xf32>
    %113 = arith.addf %111, %112 : vector<8x128xf32>
    %114 = arith.addf %79, %113 : vector<8x128xf32>
    %c0_47 = arith.constant 0 : index
    %c0_48 = arith.constant 0 : index
    %c0_49 = arith.constant 0 : index
    %115 = vector.load %arg11[%c0_47, %c0_48, %c0_49] : memref<1x8x128xf32, #tpu.memory_space<vmem>>, vector<1x8x128xf32>
    %116 = vector.shape_cast %115 : vector<1x8x128xf32> to vector<8x128xf32>
    %117 = vector.shape_cast %114 : vector<8x128xf32> to vector<1x8x128xf32>
    tpu.vector_store %arg11[%c0_47, %c0_48, %c0_49], %117 {strides = array<i32>} : memref<1x8x128xf32, #tpu.memory_space<vmem>>, vector<1x8x128xf32>,
    return
  }
  func.func @transform_0(%arg0: i32, %arg1: i32) -> (i32, i32, i32) {
    %c0_i32 = arith.constant 0 : i32
    %c0_i32_0 = arith.constant 0 : i32
    return %arg0, %arg1, %c0_i32 : i32, i32, i32
  }
  func.func @transform_1(%arg0: i32, %arg1: i32) -> (i32, i32, i32) {
    %c0_i32 = arith.constant 0 : i32
    %c0_i32_0 = arith.constant 0 : i32
    %c0_i32_1 = arith.constant 0 : i32
    return %arg0, %c0_i32, %c0_i32_0 : i32, i32, i32
  }
  func.func @transform_2(%arg0: i32, %arg1: i32) -> (i32, i32) {
    %c0_i32 = arith.constant 0 : i32
    %c0_i32_0 = arith.constant 0 : i32
    %c0_i32_1 = arith.constant 0 : i32
    return %c0_i32, %c0_i32_0 : i32, i32
  }
  func.func @transform_3(%arg0: i32, %arg1: i32) -> (i32, i32) {
    %c0_i32 = arith.constant 0 : i32
    %c0_i32_0 = arith.constant 0 : i32
    %c0_i32_1 = arith.constant 0 : i32
    return %c0_i32, %c0_i32_0 : i32, i32
  }
  func.func @transform_4(%arg0: i32, %arg1: i32) -> (i32, i32) {
    %c0_i32 = arith.constant 0 : i32
    %c0_i32_0 = arith.constant 0 : i32
    %c0_i32_1 = arith.constant 0 : i32
    return %c0_i32, %c0_i32_0 : i32, i32
  }
  func.func @transform_5(%arg0: i32, %arg1: i32) -> (i32, i32) {
    %c0_i32 = arith.constant 0 : i32
    %c0_i32_0 = arith.constant 0 : i32
    %c0_i32_1 = arith.constant 0 : i32
    return %c0_i32, %c0_i32_0 : i32, i32
  }
  func.func @transform_6(%arg0: i32, %arg1: i32) -> (i32, i32) {
    %c0_i32 = arith.constant 0 : i32
    %c0_i32_0 = arith.constant 0 : i32
    %c0_i32_1 = arith.constant 0 : i32
    return %c0_i32, %c0_i32_0 : i32, i32
  }
  func.func @transform_7(%arg0: i32, %arg1: i32) -> (i32, i32) {
    %c0_i32 = arith.constant 0 : i32
    %c0_i32_0 = arith.constant 0 : i32
    %c0_i32_1 = arith.constant 0 : i32
    return %c0_i32, %c0_i32_0 : i32, i32
  }
  func.func @transform_8(%arg0: i32, %arg1: i32) -> (i32, i32) {
    %c0_i32 = arith.constant 0 : i32
    %c0_i32_0 = arith.constant 0 : i32
    %c0_i32_1 = arith.constant 0 : i32
    return %c0_i32, %c0_i32_0 : i32, i32
  }
  func.func @transform_9(%arg0: i32, %arg1: i32) -> (i32, i32, i32) {
    %c0_i32 = arith.constant 0 : i32
    %c0_i32_0 = arith.constant 0 : i32
    return %arg0, %arg1, %c0_i32 : i32, i32, i32
  }
}

</mosaic_0001>

<llo_original>
// kernel: tpu_custom_call.1
$region0: #{tpu_custom_call.1}
  #allocation0 [shape = 'u32[]', space=smem, size = 0x4, offset = 0x4, fixed_abs, tag = 'smem constant byte address 0x4 - core index']
  #allocation1 [shape = 'u32[72,128]{1,0:T(1,128)}', space=vmem, size = 0x9000, scoped, tag = 'internal scratch']
  %s0 = inlined_call_operand.hbm [shape: f32[2,8,128], index: 0, kind: input, shape index: {}]
  %s1 = inlined_call_operand.hbm [shape: f32[2,8,128], index: 1, kind: input, shape index: {}]
  %s2 = inlined_call_operand.hbm [shape: bf16[128,128], index: 2, kind: input, shape index: {}]
  %s3 = inlined_call_operand.hbm [shape: bf16[128,256], index: 3, kind: input, shape index: {}]
  %s4 = inlined_call_operand.hbm [shape: bf16[128,128], index: 4, kind: input, shape index: {}]
  %s5 = inlined_call_operand.hbm [shape: bf16[128,256], index: 5, kind: input, shape index: {}]
  %s6 = inlined_call_operand.hbm [shape: bf16[256,128], index: 6, kind: input, shape index: {}]
  %s7 = inlined_call_operand.hbm [shape: f32[9,128], index: 7, kind: input, shape index: {}]
  %s8 = inlined_call_operand.vmem [shape: f32[1,256], index: 8, kind: input, shape index: {}]
  %s9 = inlined_call_operand.hbm [shape: f32[2,8,128], index: 9, kind: output, shape index: {}]
  %s10 = sld [smem:[#allocation0]]
  $region101: #{tpu_custom_call.1} parent=0
    _
  %s12 = ssub.s32 1, %s10
  %s13 = scalar_select 0, %s12, %s10
  $region1: #{tpu_custom_call.1} parent=0
    #allocation2 [shape = 'u8[8192]{0}', space=vmem, size = 0x2000, scoped, tag = 'input window, operand 0']
    #allocation3 [shape = 's32[2]{0}', space=sflag, size = 0x8, scoped, tag = 'scoped memory for tpu_custom_call.1']
    #allocation4 [shape = 's32[2]{0}', space=sflag, size = 0x8, scoped, tag = 'scoped memory for tpu_custom_call.1']
    #allocation5 [shape = 'u8[8192]{0}', space=vmem, size = 0x2000, scoped, tag = 'input window, operand 1']
    #allocation6 [shape = 's32[2]{0}', space=sflag, size = 0x8, scoped, tag = 'scoped memory for tpu_custom_call.1']
    #allocation7 [shape = 'u8[32768]{0}', space=vmem, size = 0x8000, scoped, tag = 'input window, operand 2, single buffered']
    #allocation8 [shape = 'u8[65536]{0}', space=vmem, size = 0x10000, scoped, tag = 'input window, operand 3, single buffered']
    #allocation9 [shape = 's32[1]{0}', space=sflag, size = 0x4, scoped, tag = 'scoped memory for tpu_custom_call.1']
    #allocation10 [shape = 'u8[32768]{0}', space=vmem, size = 0x8000, scoped, tag = 'input window, operand 4, single buffered']
    #allocation11 [shape = 'u8[65536]{0}', space=vmem, size = 0x10000, scoped, tag = 'input window, operand 5, single buffered']
    #allocation12 [shape = 's32[1]{0}', space=sflag, size = 0x4, scoped, tag = 'scoped memory for tpu_custom_call.1']
    #allocation13 [shape = 'u8[65536]{0}', space=vmem, size = 0x10000, scoped, tag = 'input window, operand 6, single buffered']
    #allocation14 [shape = 'u8[8192]{0}', space=vmem, size = 0x2000, scoped, tag = 'input window, operand 7, single buffered']
    #allocation15 [shape = 's32[1]{0}', space=sflag, size = 0x4, scoped, tag = 'scoped memory for tpu_custom_call.1']
    #allocation16 [shape = 'u8[8192]{0}', space=vmem, size = 0x2000, scoped, tag = 'output window, operand 0']
    %14 = vsyncpa [#allocation3], 0
    %s15 = scalar_lea.sflag [#allocation3], 1
    %16 = vsyncpa %s15, 0
    %17 = vsyncpa [#allocation6], 0
    %s18 = scalar_lea.sflag [#allocation6], 1
    %19 = vsyncpa %s18, 0
    %20 = vsyncpa [#allocation9], 0
    %21 = vsyncpa [#allocation12], 0
    %22 = vsyncpa [#allocation15], 0
    %23 = vsyncpa [#allocation4], 0
    %s24 = scalar_lea.sflag [#allocation4], 1
    %25 = vsyncpa %s24, 0
    loop: start=0, step=1, limit=4
    $region2: #{tpu_custom_call.1} parent=1 // loop_pre_header
      _
    $region3: #{tpu_custom_call.1} parent=1 // loop_header
      %s27 = sphi 0, %s31
      %p28 = scmp.ge.s32.totalorder %s27, 4
      %s34 = sphi 0, %s46
      %s35 = sphi 0, %s42
      %s36 = sphi 0, %s34
      %s37 = sphi 0, %s35
      %s38 = sphi 0, %s36
      %s39 = sphi 0, %s37
      %s51 = sphi 0, %s53
      %s54 = sphi 0, %s51
      %s55 = sphi 0, %s54
      %s71 = sphi 0, %s55
      %s77 = sphi 0, %s79
      %s80 = sphi 0, %s77
      %s81 = sphi 0, %s80
      %s97 = sphi 0, %s81
      %s101 = sphi 0, %s101
      %s103 = sphi 0, %s101
      %s104 = sphi 0, %s103
      %s118 = sphi 0, %s104
      %s122 = sphi 0, %s122
      %s124 = sphi 0, %s122
      %s125 = sphi 0, %s124
      %s139 = sphi 0, %s125
      %s143 = sphi 0, %s143
      %s145 = sphi 0, %s143
      %s146 = sphi 0, %s145
      %s160 = sphi 0, %s146
      %s164 = sphi 0, %s164
      %s166 = sphi 0, %s164
      %s167 = sphi 0, %s166
      %s181 = sphi 0, %s167
      %s185 = sphi 0, %s185
      %s187 = sphi 0, %s185
      %s188 = sphi 0, %s187
      %s202 = sphi 0, %s188
      %s206 = sphi 0, %s206
      %s208 = sphi 0, %s206
      %s209 = sphi 0, %s208
      %s223 = sphi 0, %s209
      %s227 = sphi 0, %s227
      %s229 = sphi 0, %s227
      %s230 = sphi 0, %s229
      %s244 = sphi 0, %s230
      %s252 = sphi 0, %s254
      %s255 = sphi 0, %s252
      %s256 = sphi 0, %s255
      %s272 = sphi 0, %s256
    $region4: #{tpu_custom_call.1} parent=1 // loop_header_branch
      %30 = sbr.rel (%p28) target = $region8
    $region5: #{tpu_custom_call.1} parent=1 // loop_body
      %s32 = ssub.s32 %s27, 1
      %s33 = ssub.s32 %s27, 2
      %s40 = sadd.s32 1, %s35
      %p41 = scmp.ge.s32.totalorder %s40, 1
      %s42 = scalar_select %p41, 0, %s40
      %s43 = sadd.s32 1, %s34
      %s44 = scalar_select %p41, %s43, %s34
      %p45 = scmp.ge.s32.totalorder %s44, 2
      %s46 = scalar_select %p45, 0, %s44
      %s47 = ssub.s32 %s34, %s46
      %s48 = ssub.s32 %s35, %s42
      %s49 = sor.u32 %s47, %s48
      %p50 = scmp.eq.s32.totalorder %s49, 0
      %s52 = sadd.s32 %s51, 1
      %s53 = scalar_select %p50, %s51, %s52
      %p56 = pneg %p50
      %p57 = scmp.eq.s32.totalorder %s27, 1
      %p58 = por %p56, %p57
      %p59 = scmp.ne.s32.totalorder %s51, %s54
      %p60 = scmp.eq.s32.totalorder %s27, 0
      %p61 = por %p59, %p60
      %p62 = scmp.ne.s32.totalorder %s51, %s54
      %p63 = scmp.eq.s32.totalorder %s32, 1
      %p64 = por %p62, %p63
      %p65 = scmp.ne.s32.totalorder %s54, %s55
      %p66 = scmp.eq.s32.totalorder %s32, 0
      %p67 = por %p65, %p66
      %p68 = scmp.ne.s32.totalorder %s54, %s55
      %p69 = scmp.eq.s32.totalorder %s33, 1
      %p70 = por %p68, %p69
      %p72 = scmp.ne.s32.totalorder %s55, %s71
      %p73 = scmp.eq.s32.totalorder %s33, 0
      %p74 = por %p72, %p73
      %s75 = ssub.s32 %s34, %s46
      %p76 = scmp.eq.s32.totalorder %s75, 0
      %s78 = sadd.s32 %s77, 1
      %s79 = scalar_select %p76, %s77, %s78
      %p82 = pneg %p76
      %p83 = scmp.eq.s32.totalorder %s27, 1
      %p84 = por %p82, %p83
      %p85 = scmp.ne.s32.totalorder %s77, %s80
      %p86 = scmp.eq.s32.totalorder %s27, 0
      %p87 = por %p85, %p86
      %p88 = scmp.ne.s32.totalorder %s77, %s80
      %p89 = scmp.eq.s32.totalorder %s32, 1
      %p90 = por %p88, %p89
      %p91 = scmp.ne.s32.totalorder %s80, %s81
      %p92 = scmp.eq.s32.totalorder %s32, 0
      %p93 = por %p91, %p92
      %p94 = scmp.ne.s32.totalorder %s80, %s81
      %p95 = scmp.eq.s32.totalorder %s33, 1
      %p96 = por %p94, %p95
      %p98 = scmp.ne.s32.totalorder %s81, %s97
      %p99 = scmp.eq.s32.totalorder %s33, 0
      %p100 = por %p98, %p99
      %s102 = sadd.s32 %s101, 1
      %p105 = scmp.eq.s32.totalorder %s27, 1
      %p106 = scmp.ne.s32.totalorder %s101, %s103
      %p107 = scmp.eq.s32.totalorder %s27, 0
      %p108 = por %p106, %p107
      %p109 = scmp.ne.s32.totalorder %s101, %s103
      %p110 = scmp.eq.s32.totalorder %s32, 1
      %p111 = por %p109, %p110
      %p112 = scmp.ne.s32.totalorder %s103, %s104
      %p113 = scmp.eq.s32.totalorder %s32, 0
      %p114 = por %p112, %p113
      %p115 = scmp.ne.s32.totalorder %s103, %s104
      %p116 = scmp.eq.s32.totalorder %s33, 1
      %p117 = por %p115, %p116
      %p119 = scmp.ne.s32.totalorder %s104, %s118
      %p120 = scmp.eq.s32.totalorder %s33, 0
      %p121 = por %p119, %p120
      %s123 = sadd.s32 %s122, 1
      %p126 = scmp.eq.s32.totalorder %s27, 1
      %p127 = scmp.ne.s32.totalorder %s122, %s124
      %p128 = scmp.eq.s32.totalorder %s27, 0
      %p129 = por %p127, %p128
      %p130 = scmp.ne.s32.totalorder %s122, %s124
      %p131 = scmp.eq.s32.totalorder %s32, 1
      %p132 = por %p130, %p131
      %p133 = scmp.ne.s32.totalorder %s124, %s125
      %p134 = scmp.eq.s32.totalorder %s32, 0
      %p135 = por %p133, %p134
      %p136 = scmp.ne.s32.totalorder %s124, %s125
      %p137 = scmp.eq.s32.totalorder %s33, 1
      %p138 = por %p136, %p137
      %p140 = scmp.ne.s32.totalorder %s125, %s139
      %p141 = scmp.eq.s32.totalorder %s33, 0
      %p142 = por %p140, %p141
      %s144 = sadd.s32 %s143, 1
      %p147 = scmp.eq.s32.totalorder %s27, 1
      %p148 = scmp.ne.s32.totalorder %s143, %s145
      %p149 = scmp.eq.s32.totalorder %s27, 0
      %p150 = por %p148, %p149
      %p151 = scmp.ne.s32.totalorder %s143, %s145
      %p152 = scmp.eq.s32.totalorder %s32, 1
      %p153 = por %p151, %p152
      %p154 = scmp.ne.s32.totalorder %s145, %s146
      %p155 = scmp.eq.s32.totalorder %s32, 0
      %p156 = por %p154, %p155
      %p157 = scmp.ne.s32.totalorder %s145, %s146
      %p158 = scmp.eq.s32.totalorder %s33, 1
      %p159 = por %p157, %p158
      %p161 = scmp.ne.s32.totalorder %s146, %s160
      %p162 = scmp.eq.s32.totalorder %s33, 0
      %p163 = por %p161, %p162
      %s165 = sadd.s32 %s164, 1
      %p168 = scmp.eq.s32.totalorder %s27, 1
      %p169 = scmp.ne.s32.totalorder %s164, %s166
      %p170 = scmp.eq.s32.totalorder %s27, 0
      %p171 = por %p169, %p170
      %p172 = scmp.ne.s32.totalorder %s164, %s166
      %p173 = scmp.eq.s32.totalorder %s32, 1
      %p174 = por %p172, %p173
      %p175 = scmp.ne.s32.totalorder %s166, %s167
      %p176 = scmp.eq.s32.totalorder %s32, 0
      %p177 = por %p175, %p176
      %p178 = scmp.ne.s32.totalorder %s166, %s167
      %p179 = scmp.eq.s32.totalorder %s33, 1
      %p180 = por %p178, %p179
      %p182 = scmp.ne.s32.totalorder %s167, %s181
      %p183 = scmp.eq.s32.totalorder %s33, 0
      %p184 = por %p182, %p183
      %s186 = sadd.s32 %s185, 1
      %p189 = scmp.eq.s32.totalorder %s27, 1
      %p190 = scmp.ne.s32.totalorder %s185, %s187
      %p191 = scmp.eq.s32.totalorder %s27, 0
      %p192 = por %p190, %p191
      %p193 = scmp.ne.s32.totalorder %s185, %s187
      %p194 = scmp.eq.s32.totalorder %s32, 1
      %p195 = por %p193, %p194
      %p196 = scmp.ne.s32.totalorder %s187, %s188
      %p197 = scmp.eq.s32.totalorder %s32, 0
      %p198 = por %p196, %p197
      %p199 = scmp.ne.s32.totalorder %s187, %s188
      %p200 = scmp.eq.s32.totalorder %s33, 1
      %p201 = por %p199, %p200
      %p203 = scmp.ne.s32.totalorder %s188, %s202
      %p204 = scmp.eq.s32.totalorder %s33, 0
      %p205 = por %p203, %p204
      %s207 = sadd.s32 %s206, 1
      %p210 = scmp.eq.s32.totalorder %s27, 1
      %p211 = scmp.ne.s32.totalorder %s206, %s208
      %p212 = scmp.eq.s32.totalorder %s27, 0
      %p213 = por %p211, %p212
      %p214 = scmp.ne.s32.totalorder %s206, %s208
      %p215 = scmp.eq.s32.totalorder %s32, 1
      %p216 = por %p214, %p215
      %p217 = scmp.ne.s32.totalorder %s208, %s209
      %p218 = scmp.eq.s32.totalorder %s32, 0
      %p219 = por %p217, %p218
      %p220 = scmp.ne.s32.totalorder %s208, %s209
      %p221 = scmp.eq.s32.totalorder %s33, 1
      %p222 = por %p220, %p221
      %p224 = scmp.ne.s32.totalorder %s209, %s223
      %p225 = scmp.eq.s32.totalorder %s33, 0
      %p226 = por %p224, %p225
      %s228 = sadd.s32 %s227, 1
      %p231 = scmp.eq.s32.totalorder %s27, 1
      %p232 = scmp.ne.s32.totalorder %s227, %s229
      %p233 = scmp.eq.s32.totalorder %s27, 0
      %p234 = por %p232, %p233
      %p235 = scmp.ne.s32.totalorder %s227, %s229
      %p236 = scmp.eq.s32.totalorder %s32, 1
      %p237 = por %p235, %p236
      %p238 = scmp.ne.s32.totalorder %s229, %s230
      %p239 = scmp.eq.s32.totalorder %s32, 0
      %p240 = por %p238, %p239
      %p241 = scmp.ne.s32.totalorder %s229, %s230
      %p242 = scmp.eq.s32.totalorder %s33, 1
      %p243 = por %p241, %p242
      %p245 = scmp.ne.s32.totalorder %s230, %s244
      %p246 = scmp.eq.s32.totalorder %s33, 0
      %p247 = por %p245, %p246
      %s248 = ssub.s32 %s34, %s46
      %s249 = ssub.s32 %s35, %s42
      %s250 = sor.u32 %s248, %s249
      %p251 = scmp.eq.s32.totalorder %s250, 0
      %s253 = sadd.s32 %s252, 1
      %s254 = scalar_select %p251, %s252, %s253
      %p257 = pneg %p251
      %p258 = scmp.eq.s32.totalorder %s27, 1
      %p259 = por %p257, %p258
      %p260 = scmp.ne.s32.totalorder %s252, %s255
      %p261 = scmp.eq.s32.totalorder %s27, 0
      %p262 = por %p260, %p261
      %p263 = scmp.ne.s32.totalorder %s252, %s255
      %p264 = scmp.eq.s32.totalorder %s32, 1
      %p265 = por %p263, %p264
      %p266 = scmp.ne.s32.totalorder %s255, %s256
      %p267 = scmp.eq.s32.totalorder %s32, 0
      %p268 = por %p266, %p267
      %p269 = scmp.ne.s32.totalorder %s255, %s256
      %p270 = scmp.eq.s32.totalorder %s33, 1
      %p271 = por %p269, %p270
      %p273 = scmp.ne.s32.totalorder %s256, %s272
      %p274 = scmp.eq.s32.totalorder %s33, 0
      %p275 = por %p273, %p274
      %p276 = scmp.le.s32.totalorder 1, %s27
      %p277 = scmp.lt.s32.totalorder %s27, 3
      %p278 = pnand %p276, %p277
      %p279 = pneg %p278
      // Predicated region
      $region9: #{tpu_custom_call.1} parent=5 // pred_check
        _
      $region10: #{tpu_custom_call.1} parent=5 // pred_check_branch
        %281 = sbr.rel (%p278) target = $region12
      $region11: #{tpu_custom_call.1} parent=5 // pred_region
        %s282 = ssub.s32 %s27, 1
        // Predicated region
        $region13: #{tpu_custom_call.1} parent=11 // pred_check
          %p283 = pneg %p114
        $region14: #{tpu_custom_call.1} parent=11 // pred_check_branch
          %285 = sbr.rel (%p283) target = $region16
        $region15: #{tpu_custom_call.1} parent=11 // pred_region
          %287 = vsyncadd [#allocation6], 0
          %s288 = sshll.u32 %s2, 4
          %s289 = int_to_ptr.hbm [resolvable:$true] %s288
          %s290 = sshll.u32 [#allocation7], 4
          %s291 = int_to_ptr.vmem [resolvable:$true] %s290
          %296 = dma.hbm_to_vmem [thread:$0]  %s289, 1024, %s291, [#allocation6], 64, 64, 4
        $region16: #{tpu_custom_call.1} parent=11 // pred_fallthru
          _
        // Predicated region
        $region17: #{tpu_custom_call.1} parent=11 // pred_check
          %p297 = pneg %p135
        $region18: #{tpu_custom_call.1} parent=11 // pred_check_branch
          %299 = sbr.rel (%p297) target = $region20
        $region19: #{tpu_custom_call.1} parent=11 // pred_region
          %301 = vsyncadd [#allocation9], 0
          %s302 = sshll.u32 %s3, 4
          %s303 = int_to_ptr.hbm [resolvable:$true] %s302
          %s304 = sshll.u32 [#allocation8], 4
          %s305 = int_to_ptr.vmem [resolvable:$true] %s304
          %310 = dma.hbm_to_vmem [thread:$0]  %s303, 2048, %s305, [#allocation9], 128, 128, 8
        $region20: #{tpu_custom_call.1} parent=11 // pred_fallthru
          _
        // Predicated region
        $region21: #{tpu_custom_call.1} parent=11 // pred_check
          %p311 = pneg %p156
        $region22: #{tpu_custom_call.1} parent=11 // pred_check_branch
          %313 = sbr.rel (%p311) target = $region24
        $region23: #{tpu_custom_call.1} parent=11 // pred_region
          %315 = vsyncadd [#allocation9], 0
          %s316 = sshll.u32 %s4, 4
          %s317 = int_to_ptr.hbm [resolvable:$true] %s316
          %s318 = sshll.u32 [#allocation10], 4
          %s319 = int_to_ptr.vmem [resolvable:$true] %s318
          %324 = dma.hbm_to_vmem [thread:$0]  %s317, 1024, %s319, [#allocation9], 64, 64, 4
        $region24: #{tpu_custom_call.1} parent=11 // pred_fallthru
          _
        // Predicated region
        $region25: #{tpu_custom_call.1} parent=11 // pred_check
          %p325 = pneg %p177
        $region26: #{tpu_custom_call.1} parent=11 // pred_check_branch
          %327 = sbr.rel (%p325) target = $region28
        $region27: #{tpu_custom_call.1} parent=11 // pred_region
          %329 = vsyncadd [#allocation12], 0
          %s330 = sshll.u32 %s5, 4
          %s331 = int_to_ptr.hbm [resolvable:$true] %s330
          %s332 = sshll.u32 [#allocation11], 4
          %s333 = int_to_ptr.vmem [resolvable:$true] %s332
          %338 = dma.hbm_to_vmem [thread:$0]  %s331, 2048, %s333, [#allocation12], 128, 128, 8
        $region28: #{tpu_custom_call.1} parent=11 // pred_fallthru
          _
        // Predicated region
        $region29: #{tpu_custom_call.1} parent=11 // pred_check
          %p339 = pneg %p198
        $region30: #{tpu_custom_call.1} parent=11 // pred_check_branch
          %341 = sbr.rel (%p339) target = $region32
        $region31: #{tpu_custom_call.1} parent=11 // pred_region
          %343 = vsyncadd [#allocation12], 0
          %s344 = sshll.u32 %s6, 4
          %s345 = int_to_ptr.hbm [resolvable:$true] %s344
          %s346 = sshll.u32 [#allocation13], 4
          %s347 = int_to_ptr.vmem [resolvable:$true] %s346
          %352 = dma.hbm_to_vmem [thread:$0]  %s345, 2048, %s347, [#allocation12], 64, 64, 4
        $region32: #{tpu_custom_call.1} parent=11 // pred_fallthru
          _
        // Predicated region
        $region33: #{tpu_custom_call.1} parent=11 // pred_check
          %p353 = pneg %p219
        $region34: #{tpu_custom_call.1} parent=11 // pred_check_branch
          %355 = sbr.rel (%p353) target = $region36
        $region35: #{tpu_custom_call.1} parent=11 // pred_region
          %357 = vsyncadd [#allocation15], 0
          %s358 = sshll.u32 %s7, 4
          %s359 = int_to_ptr.hbm [resolvable:$true] %s358
          %s360 = sshll.u32 [#allocation14], 4
          %s361 = int_to_ptr.vmem [resolvable:$true] %s360
          %366 = dma.hbm_to_vmem [thread:$0]  %s359, 256, %s361, [#allocation15], 128, 128, 8
        $region36: #{tpu_custom_call.1} parent=11 // pred_fallthru
          _
        // Predicated region
        $region37: #{tpu_custom_call.1} parent=11 // pred_check
          %p367 = pneg %p240
        $region38: #{tpu_custom_call.1} parent=11 // pred_check_branch
          %369 = sbr.rel (%p367) target = $region40
        $region39: #{tpu_custom_call.1} parent=11 // pred_region
          _
        $region40: #{tpu_custom_call.1} parent=11 // pred_fallthru
          _
      $region12: #{tpu_custom_call.1} parent=5 // pred_fallthru
        _
      %p370 = scmp.lt.s32.totalorder %s27, 2
      // Predicated region
      $region41: #{tpu_custom_call.1} parent=5 // pred_check
        %p371 = pneg %p370
      $region42: #{tpu_custom_call.1} parent=5 // pred_check_branch
        %373 = sbr.rel (%p371) target = $region44
      $region43: #{tpu_custom_call.1} parent=5 // pred_region
        // Predicated region
        $region45: #{tpu_custom_call.1} parent=43 // pred_check
          %p374 = pneg %p61
        $region46: #{tpu_custom_call.1} parent=43 // pred_check_branch
          %376 = sbr.rel (%p374) target = $region48
        $region47: #{tpu_custom_call.1} parent=43 // pred_region
          %s377 = sand.u32 %s51, 1
          %s378 = scalar_lea.sflag [#allocation3], %s377
          %s379 = sand.u32 %s51, 1
          %s380 = smul.addr %s379, 8
          %s381 = scalar_lea.vmem [#allocation2], %s380
          %383 = vsyncadd %s378, 0
          %s384 = sadd.s32 %s35, %s34
          %s385 = smul.addr %s384, 8
          %s386 = scalar_lea.hbm %s0, %s385
          %s388 = sshll.u32 %s386, 4
          %s389 = int_to_ptr.hbm [resolvable:$true] %s388
          %s390 = sshll.u32 %s381, 4
          %s391 = int_to_ptr.vmem [resolvable:$true] %s390
          %393 = dma.hbm_to_vmem [thread:$0]  %s389, 128, %s391, %s378
        $region48: #{tpu_custom_call.1} parent=43 // pred_fallthru
          _
        // Predicated region
        $region49: #{tpu_custom_call.1} parent=43 // pred_check
          %p394 = pneg %p87
        $region50: #{tpu_custom_call.1} parent=43 // pred_check_branch
          %396 = sbr.rel (%p394) target = $region52
        $region51: #{tpu_custom_call.1} parent=43 // pred_region
          %s397 = sand.u32 %s27, 1
          %s398 = scalar_lea.sflag [#allocation6], %s397
          %s399 = sand.u32 %s77, 1
          %s400 = smul.addr %s399, 8
          %s401 = scalar_lea.vmem [#allocation5], %s400
          %403 = vsyncadd %s398, 0
          %s404 = smul.addr %s34, 8
          %s405 = scalar_lea.hbm %s1, %s404
          %s407 = sshll.u32 %s405, 4
          %s408 = int_to_ptr.hbm [resolvable:$true] %s407
          %s409 = sshll.u32 %s401, 4
          %s410 = int_to_ptr.vmem [resolvable:$true] %s409
          %412 = dma.hbm_to_vmem [thread:$0]  %s408, 128, %s410, %s398
        $region52: #{tpu_custom_call.1} parent=43 // pred_fallthru
          _
      $region44: #{tpu_custom_call.1} parent=5 // pred_fallthru
        _
      %p413 = scmp.le.s32.totalorder 1, %s27
      %p414 = scmp.lt.s32.totalorder %s27, 3
      %p415 = pnand %p413, %p414
      %p416 = pneg %p415
      // Predicated region
      $region53: #{tpu_custom_call.1} parent=5 // pred_check
        _
      $region54: #{tpu_custom_call.1} parent=5 // pred_check_branch
        %418 = sbr.rel (%p415) target = $region56
      $region55: #{tpu_custom_call.1} parent=5 // pred_region
        %s419 = ssub.s32 %s27, 1
        %s420 = sand.u32 %s54, 1
        %s421 = scalar_lea.sflag [#allocation3], %s420
        %s422 = sand.u32 %s54, 1
        %s423 = smul.addr %s422, 8
        %s424 = scalar_lea.vmem [#allocation2], %s423
        // Predicated region
        $region57: #{tpu_custom_call.1} parent=55 // pred_check
          %p425 = pneg %p67
        $region58: #{tpu_custom_call.1} parent=55 // pred_check_branch
          %427 = sbr.rel (%p425) target = $region60
        $region59: #{tpu_custom_call.1} parent=55 // pred_region
          %429 = dma.done %s421, 128
        $region60: #{tpu_custom_call.1} parent=55 // pred_fallthru
          _
        %s430 = sand.u32 %s32, 1
        %s431 = scalar_lea.sflag [#allocation6], %s430
        %s432 = sand.u32 %s80, 1
        %s433 = smul.addr %s432, 8
        %s434 = scalar_lea.vmem [#allocation5], %s433
        // Predicated region
        $region61: #{tpu_custom_call.1} parent=55 // pred_check
          %p435 = pneg %p93
        $region62: #{tpu_custom_call.1} parent=55 // pred_check_branch
          %437 = sbr.rel (%p435) target = $region64
        $region63: #{tpu_custom_call.1} parent=55 // pred_region
          %439 = dma.done %s431, 128
        $region64: #{tpu_custom_call.1} parent=55 // pred_fallthru
          _
        // Predicated region
        $region65: #{tpu_custom_call.1} parent=55 // pred_check
          %p440 = pneg %p114
        $region66: #{tpu_custom_call.1} parent=55 // pred_check_branch
          %442 = sbr.rel (%p440) target = $region68
        $region67: #{tpu_custom_call.1} parent=55 // pred_region
          %444 = dma.done [#allocation6], 1024
        $region68: #{tpu_custom_call.1} parent=55 // pred_fallthru
          _
        // Predicated region
        $region69: #{tpu_custom_call.1} parent=55 // pred_check
          %p445 = pneg %p135
        $region70: #{tpu_custom_call.1} parent=55 // pred_check_branch
          %447 = sbr.rel (%p445) target = $region72
        $region71: #{tpu_custom_call.1} parent=55 // pred_region
          %449 = dma.done [#allocation9], 2048
        $region72: #{tpu_custom_call.1} parent=55 // pred_fallthru
          _
        // Predicated region
        $region73: #{tpu_custom_call.1} parent=55 // pred_check
          %p450 = pneg %p156
        $region74: #{tpu_custom_call.1} parent=55 // pred_check_branch
          %452 = sbr.rel (%p450) target = $region76
        $region75: #{tpu_custom_call.1} parent=55 // pred_region
          %454 = dma.done [#allocation9], 1024
        $region76: #{tpu_custom_call.1} parent=55 // pred_fallthru
          _
        // Predicated region
        $region77: #{tpu_custom_call.1} parent=55 // pred_check
          %p455 = pneg %p177
        $region78: #{tpu_custom_call.1} parent=55 // pred_check_branch
          %457 = sbr.rel (%p455) target = $region80
        $region79: #{tpu_custom_call.1} parent=55 // pred_region
          %459 = dma.done [#allocation12], 2048
        $region80: #{tpu_custom_call.1} parent=55 // pred_fallthru
          _
        // Predicated region
        $region81: #{tpu_custom_call.1} parent=55 // pred_check
          %p460 = pneg %p198
        $region82: #{tpu_custom_call.1} parent=55 // pred_check_branch
          %462 = sbr.rel (%p460) target = $region84
        $region83: #{tpu_custom_call.1} parent=55 // pred_region
          %464 = dma.done [#allocation12], 2048
        $region84: #{tpu_custom_call.1} parent=55 // pred_fallthru
          _
        // Predicated region
        $region85: #{tpu_custom_call.1} parent=55 // pred_check
          %p465 = pneg %p219
        $region86: #{tpu_custom_call.1} parent=55 // pred_check_branch
          %467 = sbr.rel (%p465) target = $region88
        $region87: #{tpu_custom_call.1} parent=55 // pred_region
          %469 = dma.done [#allocation15], 256
        $region88: #{tpu_custom_call.1} parent=55 // pred_fallthru
          _
        %s470 = sand.u32 %s54, 1
        %s471 = scalar_lea.sflag [#allocation3], %s470
        %s472 = sand.u32 %s54, 1
        %s473 = smul.addr %s472, 8
        %s474 = scalar_lea.vmem [#allocation2], %s473
        %p475 = pneg %p67
        %p476 = pneg %p64
        %s477 = sand.u32 %s32, 1
        %s478 = scalar_lea.sflag [#allocation6], %s477
        %s479 = sand.u32 %s80, 1
        %s480 = smul.addr %s479, 8
        %s481 = scalar_lea.vmem [#allocation5], %s480
        %p482 = pneg %p93
        %p483 = pneg %p90
        %p484 = pneg %p114
        %p485 = pneg %p111
        %p486 = pneg %p135
        %p487 = pneg %p132
        %p488 = pneg %p156
        %p489 = pneg %p153
        %p490 = pneg %p177
        %p491 = pneg %p174
        %p492 = pneg %p198
        %p493 = pneg %p195
        %p494 = pneg %p219
        %p495 = pneg %p216
        %p496 = pneg %p240
        %p497 = pneg %p237
        %p498 = pneg %p268
        %p499 = pneg %p265
        %s500 = sand.u32 %s255, 1
        %s501 = scalar_lea.sflag [#allocation4], %s500
        %s502 = sand.u32 %s255, 1
        %s503 = smul.addr %s502, 8
        %s504 = scalar_lea.vmem [#allocation16], %s503
        %v506 = vld [vmem:[%s424] sm:$0xff]
        %v507 = vld [vmem:[%s434] sm:$0xff]
        %v508 = vld [vmem:[#allocation14] sm:$0x1]
        %v509 = vld [vmem:[#allocation14 + $0x1] sm:$0x1]
        %v510 = vld [vmem:[#allocation14 + $0x2] sm:$0x1]
        %v511 = vld [vmem:[#allocation14 + $0x3] sm:$0x1]
        %v512 = vld [vmem:[#allocation14 + $0x4] sm:$0x1]
        %v513 = vld [vmem:[#allocation14 + $0x5] sm:$0x1]
        %v514 = vld [vmem:[#allocation14 + $0x6] sm:$0x1]
        %v515 = vld [vmem:[#allocation14 + $0x7] sm:$0x1]
        %v516 = vld [vmem:[#allocation14 + $0x8] sm:$0x1]
        %517 = vadd.xlane.f32.xlu0 %v506
        %v518 = vpop.xlane.xlu0 %517
        %v519 = vrcp.pop 128.0
        %v520 = vmul.f32 128.0, %v519
        %v521 = vsub.f32 1.0, %v520
        %v522 = vmul.f32 %v519, %v521
        %v523 = vadd.f32 %v519, %v522
        %vm524 = vweird.f32 %v519
        %v525 = vsel %vm524, %v519, %v523
        %v526 = vmul.f32 %v518, %v525
        %v527 = vsub.f32 %v506, %v526
        %v528 = vmul.f32 %v527, %v527
        %529 = vadd.xlane.f32.xlu0 %v528
        %v530 = vpop.xlane.xlu0 %529
        %v531 = vmul.f32 %v530, 0.007874016
        %v532 = vrsqrt.pop %v531
        %v533 = vmul.f32 %v532, %v531
        %v534 = vmul.f32 %v533, %v532
        %v535 = vmul.f32 0.5, %v534
        %v536 = vsub.f32 1.5, %v535
        %v537 = vmul.f32 %v532, %v536
        %v538 = vmul.f32 %v531, %v537
        %vm539 = vcmp.eq.f32.partialorder %v531, inf
        %v540 = vsel %vm539, %v531, %v538
        %vm541 = vcmp.eq.f32.partialorder %v531, 0.0
        %v542 = vand.u32 %v531, 2147483648
        %v543 = vsel %vm541, %v542, %v540
        %v544 = vadd.f32 %v543, 1e-06
        %v545 = vrcp.pop %v544
        %v546 = vmul.f32 %v527, %v545
        %v547 = vperm.slane %v512, 0
        %v548 = vmul.f32 %v547, %v546
        %v549 = vperm.slane %v513, 0
        %v550 = vadd.f32 %v548, %v549
        %v551 = vpack.c.bf16 %v550, %v550
        %v552 = vld [vmem:[#allocation7] sm:$0xf]
        %v553 = vld [vmem:[#allocation7 + $0x4] sm:$0xf]
        %v554 = vld [vmem:[#allocation7 + $0x8] sm:$0xf]
        %v555 = vld [vmem:[#allocation7 + $0xc] sm:$0xf]
        %v556 = vld [vmem:[#allocation7 + $0x10] sm:$0xf]
        %v557 = vld [vmem:[#allocation7 + $0x14] sm:$0xf]
        %v558 = vld [vmem:[#allocation7 + $0x18] sm:$0xf]
        %v559 = vld [vmem:[#allocation7 + $0x1c] sm:$0xf]
        %v560 = vld [vmem:[#allocation7 + $0x20] sm:$0xf]
        %v561 = vld [vmem:[#allocation7 + $0x24] sm:$0xf]
        %v562 = vld [vmem:[#allocation7 + $0x28] sm:$0xf]
        %v563 = vld [vmem:[#allocation7 + $0x2c] sm:$0xf]
        %v564 = vld [vmem:[#allocation7 + $0x30] sm:$0xf]
        %v565 = vld [vmem:[#allocation7 + $0x34] sm:$0xf]
        %v566 = vld [vmem:[#allocation7 + $0x38] sm:$0xf]
        %v567 = vld [vmem:[#allocation7 + $0x3c] sm:$0xf]
        %v568 = vperm.slane %v508, 0
        %v585 = vunpack.c.l.b16 %v552
        %v586 = vunpack.c.l.b16 %v553
        %v587 = vunpack.c.l.b16 %v554
        %v588 = vunpack.c.l.b16 %v555
        %v589 = vunpack.c.l.b16 %v556
        %v590 = vunpack.c.l.b16 %v557
        %v591 = vunpack.c.l.b16 %v558
        %v592 = vunpack.c.l.b16 %v559
        %v593 = vunpack.c.l.b16 %v560
        %v594 = vunpack.c.l.b16 %v561
        %v595 = vunpack.c.l.b16 %v562
        %v596 = vunpack.c.l.b16 %v563
        %v597 = vunpack.c.l.b16 %v564
        %v598 = vunpack.c.l.b16 %v565
        %v599 = vunpack.c.l.b16 %v566
        %v600 = vunpack.c.l.b16 %v567
        %v601 = vpack.c.b16 %v586, %v585
        %v602 = vpack.c.b16 %v588, %v587
        %v603 = vpack.c.b16 %v590, %v589
        %v604 = vpack.c.b16 %v592, %v591
        %v605 = vpack.c.b16 %v594, %v593
        %v606 = vpack.c.b16 %v596, %v595
        %v607 = vpack.c.b16 %v598, %v597
        %v608 = vpack.c.b16 %v600, %v599
        %617 = vmatpush.bf16.msra.mxu0 %v608
        %618 = vmatpush.bf16.msra.mxu0 %v607
        %619 = vmatpush.bf16.msra.mxu0 %v606
        %620 = vmatpush.bf16.msra.mxu0 %v605
        %621 = vmatpush.bf16.msra.mxu0 %v604
        %622 = vmatpush.bf16.msra.mxu0 %v603
        %623 = vmatpush.bf16.msra.mxu0 %v602
        %624 = vmatpush.bf16.msra.mxu0 %v601
        %625 = vmatmul.bf16.gmra.mxu0 %v551
        %v626 = vpop.f32.mrf.mxu0
        %v627 = vadd.f32 %v568, %v626
        %v628 = vpop.f32.mrf.mxu0
        %629 = vdwg.mxu0
        %v630 = vpack.c.bf16 %v507, %v507
        %v631 = vld [vmem:[#allocation8] sm:$0xff]
        %v632 = vld [vmem:[#allocation8 + $0x8] sm:$0xff]
        %v633 = vld [vmem:[#allocation8 + $0x10] sm:$0xff]
        %v634 = vld [vmem:[#allocation8 + $0x18] sm:$0xff]
        %v635 = vld [vmem:[#allocation8 + $0x20] sm:$0xff]
        %v636 = vld [vmem:[#allocation8 + $0x28] sm:$0xff]
        %v637 = vld [vmem:[#allocation8 + $0x30] sm:$0xff]
        %v638 = vld [vmem:[#allocation8 + $0x38] sm:$0xff]
        %v639 = vld [vmem:[#allocation8 + $0x40] sm:$0xff]
        %v640 = vld [vmem:[#allocation8 + $0x48] sm:$0xff]
        %v641 = vld [vmem:[#allocation8 + $0x50] sm:$0xff]
        %v642 = vld [vmem:[#allocation8 + $0x58] sm:$0xff]
        %v643 = vld [vmem:[#allocation8 + $0x60] sm:$0xff]
        %v644 = vld [vmem:[#allocation8 + $0x68] sm:$0xff]
        %v645 = vld [vmem:[#allocation8 + $0x70] sm:$0xff]
        %v646 = vld [vmem:[#allocation8 + $0x78] sm:$0xff]
        %v663 = vunpack.c.l.b16 %v631
        %v664 = vunpack.c.h.b16 %v631
        %v665 = vunpack.c.l.b16 %v632
        %v666 = vunpack.c.h.b16 %v632
        %v667 = vunpack.c.l.b16 %v633
        %v668 = vunpack.c.h.b16 %v633
        %v669 = vunpack.c.l.b16 %v634
        %v670 = vunpack.c.h.b16 %v634
        %v671 = vunpack.c.l.b16 %v635
        %v672 = vunpack.c.h.b16 %v635
        %v673 = vunpack.c.l.b16 %v636
        %v674 = vunpack.c.h.b16 %v636
        %v675 = vunpack.c.l.b16 %v637
        %v676 = vunpack.c.h.b16 %v637
        %v677 = vunpack.c.l.b16 %v638
        %v678 = vunpack.c.h.b16 %v638
        %v679 = vunpack.c.l.b16 %v639
        %v680 = vunpack.c.h.b16 %v639
        %v681 = vunpack.c.l.b16 %v640
        %v682 = vunpack.c.h.b16 %v640
        %v683 = vunpack.c.l.b16 %v641
        %v684 = vunpack.c.h.b16 %v641
        %v685 = vunpack.c.l.b16 %v642
        %v686 = vunpack.c.h.b16 %v642
        %v687 = vunpack.c.l.b16 %v643
        %v688 = vunpack.c.h.b16 %v643
        %v689 = vunpack.c.l.b16 %v644
        %v690 = vunpack.c.h.b16 %v644
        %v691 = vunpack.c.l.b16 %v645
        %v692 = vunpack.c.h.b16 %v645
        %v693 = vunpack.c.l.b16 %v646
        %v694 = vunpack.c.h.b16 %v646
        %v695 = vpack.c.b16 %v665, %v663
        %v696 = vpack.c.b16 %v666, %v664
        %v697 = vpack.c.b16 %v669, %v667
        %v698 = vpack.c.b16 %v670, %v668
        %v699 = vpack.c.b16 %v673, %v671
        %v700 = vpack.c.b16 %v674, %v672
        %v701 = vpack.c.b16 %v677, %v675
        %v702 = vpack.c.b16 %v678, %v676
        %v703 = vpack.c.b16 %v681, %v679
        %v704 = vpack.c.b16 %v682, %v680
        %v705 = vpack.c.b16 %v685, %v683
        %v706 = vpack.c.b16 %v686, %v684
        %v707 = vpack.c.b16 %v689, %v687
        %v708 = vpack.c.b16 %v690, %v688
        %v709 = vpack.c.b16 %v693, %v691
        %v710 = vpack.c.b16 %v694, %v692
        %727 = vmatpush.bf16.msra.mxu0 %v709
        %728 = vmatpush.bf16.msra.mxu0 %v707
        %729 = vmatpush.bf16.msra.mxu0 %v705
        %730 = vmatpush.bf16.msra.mxu0 %v703
        %731 = vmatpush.bf16.msra.mxu0 %v701
        %732 = vmatpush.bf16.msra.mxu0 %v699
        %733 = vmatpush.bf16.msra.mxu0 %v697
        %734 = vmatpush.bf16.msra.mxu0 %v695
        %735 = vmatmul.bf16.gmra.mxu0 %v630
        %v736 = vpop.f32.mrf.mxu0
        %v737 = vadd.f32 0.0, %v736
        %v738 = vpop.f32.mrf.mxu0
        %739 = vdwg.mxu0
        %740 = vmatpush.bf16.msra.mxu0 %v710
        %741 = vmatpush.bf16.msra.mxu0 %v708
        %742 = vmatpush.bf16.msra.mxu0 %v706
        %743 = vmatpush.bf16.msra.mxu0 %v704
        %744 = vmatpush.bf16.msra.mxu0 %v702
        %745 = vmatpush.bf16.msra.mxu0 %v700
        %746 = vmatpush.bf16.msra.mxu0 %v698
        %747 = vmatpush.bf16.msra.mxu0 %v696
        %748 = vmatmul.bf16.gmra.mxu0 %v630
        %v749 = vpop.f32.mrf.mxu0
        %v750 = vadd.f32 0.0, %v749
        %v751 = vpop.f32.mrf.mxu0
        %752 = vdwg.mxu0
        %v753 = vperm.slane %v509, 0
        %v754 = vadd.f32 %v737, %v753
        %v755 = vperm.slane %v510, 0
        %v756 = vadd.f32 %v750, %v755
        %758 = vrot.lane.b32.xlu0 %v627, 96
        %v759 = vpop.permute.xlu0 %758
        %761 = vrot.lane.b32.xlu0 %v627, 64
        %v762 = vpop.permute.xlu0 %761
        %764 = vrot.lane.b32.xlu0 %v627, 32
        %v765 = vpop.permute.xlu0 %764
        %v767 = vrot.slane %v762, 4
        %vm768 = vcmask 1047556
        %v769 = vsel %vm768, %v767, %v627
        %v770 = vrot.slane %v627, 4
        %v771 = vsel %vm768, %v762, %v770
        %v773 = vunpack.c.l.s4 1983009808
        %v774 = vunpack.c.0.s8 %v773
        %v775 = vperm.slane %v769, %v774
        %v777 = vunpack.c.l.s4 1983009808
        %v778 = vunpack.c.0.s8 %v777
        %v779 = vperm.slane %v771, %v778
        %v780 = vrot.slane %v765, 4
        %v781 = vsel %vm768, %v780, %v759
        %v782 = vrot.slane %v759, 4
        %v783 = vsel %vm768, %v765, %v782
        %v785 = vunpack.c.l.s4 1983009808
        %v786 = vunpack.c.0.s8 %v785
        %v787 = vperm.slane %v781, %v786
        %v789 = vunpack.c.l.s4 1983009808
        %v790 = vunpack.c.0.s8 %v789
        %v791 = vperm.slane %v783, %v790
        %v792 = vrot.slane %v787, 4
        %v793 = vsel %vm768, %v792, %v775
        %v794 = vrot.slane %v775, 4
        %v795 = vsel %vm768, %v787, %v794
        %v797 = vunpack.c.l.s4 1934713408
        %v798 = vunpack.c.0.s8 %v797
        %v799 = vperm.slane %v793, %v798
        %v801 = vunpack.c.l.s4 1934713408
        %v802 = vunpack.c.0.s8 %v801
        %v803 = vperm.slane %v795, %v802
        %v804 = vrot.slane %v791, 4
        %v805 = vsel %vm768, %v804, %v779
        %v806 = vrot.slane %v779, 4
        %v807 = vsel %vm768, %v791, %v806
        %v809 = vunpack.c.l.s4 1934713408
        %v810 = vunpack.c.0.s8 %v809
        %v811 = vperm.slane %v805, %v810
        %v813 = vunpack.c.l.s4 1934713408
        %v814 = vunpack.c.0.s8 %v813
        %v815 = vperm.slane %v807, %v814
        %v816 = vrot.slane %v799, 4
        %v817 = vsel %vm768, 0.0, %v816
        %v818 = vrot.slane %v803, 4
        %v819 = vsel %vm768, 0.0, %v818
        %v820 = vrot.slane %v811, 4
        %v821 = vsel %vm768, 0.0, %v820
        %v822 = vrot.slane %v815, 4
        %v823 = vsel %vm768, 0.0, %v822
        %v824 = vsel %vm768, %v818, %v799
        %v826 = vunpack.c.l.s4 1983009808
        %v827 = vunpack.c.0.s8 %v826
        %v828 = vperm.slane %v824, %v827
        %v829 = vrot.slane %v819, 4
        %v830 = vsel %vm768, %v829, %v817
        %v832 = vunpack.c.l.s4 1983009808
        %v833 = vunpack.c.0.s8 %v832
        %v834 = vperm.slane %v830, %v833
        %v835 = vsel %vm768, %v822, %v811
        %v837 = vunpack.c.l.s4 1983009808
        %v838 = vunpack.c.0.s8 %v837
        %v839 = vperm.slane %v835, %v838
        %v840 = vrot.slane %v823, 4
        %v841 = vsel %vm768, %v840, %v821
        %v843 = vunpack.c.l.s4 1983009808
        %v844 = vunpack.c.0.s8 %v843
        %v845 = vperm.slane %v841, %v844
        %v846 = vrot.slane %v834, 4
        %v847 = vsel %vm768, %v846, %v828
        %v848 = vrot.slane %v828, 4
        %v849 = vsel %vm768, %v834, %v848
        %v851 = vunpack.c.l.s4 1934713408
        %v852 = vunpack.c.0.s8 %v851
        %v853 = vperm.slane %v847, %v852
        %v855 = vunpack.c.l.s4 1934713408
        %v856 = vunpack.c.0.s8 %v855
        %v857 = vperm.slane %v849, %v856
        %v858 = vrot.slane %v845, 4
        %v859 = vsel %vm768, %v858, %v839
        %v860 = vrot.slane %v839, 4
        %v861 = vsel %vm768, %v845, %v860
        %v863 = vunpack.c.l.s4 1934713408
        %v864 = vunpack.c.0.s8 %v863
        %v865 = vperm.slane %v859, %v864
        %v867 = vunpack.c.l.s4 1934713408
        %v868 = vunpack.c.0.s8 %v867
        %v869 = vperm.slane %v861, %v868
        %v870 = vrot.slane %v865, 4
        %v871 = vsel %vm768, %v870, %v853
        %v872 = vrot.slane %v853, 4
        %v873 = vsel %vm768, %v865, %v872
        %v874 = vrot.slane %v869, 4
        %v875 = vsel %vm768, %v874, %v857
        %v876 = vrot.slane %v857, 4
        %v877 = vsel %vm768, %v869, %v876
        %v878 = vpack.c.bf16 %v871, %v871
        %v879 = vpack.c.bf16 %v873, %v873
        %v880 = vpack.c.bf16 %v875, %v875
        %v881 = vpack.c.bf16 %v877, %v877
        %883 = vrot.lane.b32.xlu0 %v754, 96
        %v884 = vpop.permute.xlu0 %883
        %886 = vrot.lane.b32.xlu0 %v754, 64
        %v887 = vpop.permute.xlu0 %886
        %889 = vrot.lane.b32.xlu0 %v754, 32
        %v890 = vpop.permute.xlu0 %889
        %v892 = vrot.slane %v887, 4
        %v893 = vsel %vm768, %v892, %v754
        %v894 = vrot.slane %v754, 4
        %v895 = vsel %vm768, %v887, %v894
        %v897 = vunpack.c.l.s4 1983009808
        %v898 = vunpack.c.0.s8 %v897
        %v899 = vperm.slane %v893, %v898
        %v901 = vunpack.c.l.s4 1983009808
        %v902 = vunpack.c.0.s8 %v901
        %v903 = vperm.slane %v895, %v902
        %v904 = vrot.slane %v890, 4
        %v905 = vsel %vm768, %v904, %v884
        %v906 = vrot.slane %v884, 4
        %v907 = vsel %vm768, %v890, %v906
        %v909 = vunpack.c.l.s4 1983009808
        %v910 = vunpack.c.0.s8 %v909
        %v911 = vperm.slane %v905, %v910
        %v913 = vunpack.c.l.s4 1983009808
        %v914 = vunpack.c.0.s8 %v913
        %v915 = vperm.slane %v907, %v914
        %v916 = vrot.slane %v911, 4
        %v917 = vsel %vm768, %v916, %v899
        %v918 = vrot.slane %v899, 4
        %v919 = vsel %vm768, %v911, %v918
        %v921 = vunpack.c.l.s4 1934713408
        %v922 = vunpack.c.0.s8 %v921
        %v923 = vperm.slane %v917, %v922
        %v925 = vunpack.c.l.s4 1934713408
        %v926 = vunpack.c.0.s8 %v925
        %v927 = vperm.slane %v919, %v926
        %v928 = vrot.slane %v915, 4
        %v929 = vsel %vm768, %v928, %v903
        %v930 = vrot.slane %v903, 4
        %v931 = vsel %vm768, %v915, %v930
        %v933 = vunpack.c.l.s4 1934713408
        %v934 = vunpack.c.0.s8 %v933
        %v935 = vperm.slane %v929, %v934
        %v937 = vunpack.c.l.s4 1934713408
        %v938 = vunpack.c.0.s8 %v937
        %v939 = vperm.slane %v931, %v938
        %v940 = vrot.slane %v923, 4
        %v941 = vsel %vm768, 0.0, %v940
        %v942 = vrot.slane %v927, 4
        %v943 = vsel %vm768, 0.0, %v942
        %v944 = vrot.slane %v935, 4
        %v945 = vsel %vm768, 0.0, %v944
        %v946 = vrot.slane %v939, 4
        %v947 = vsel %vm768, 0.0, %v946
        %v948 = vsel %vm768, %v942, %v923
        %v950 = vunpack.c.l.s4 1983009808
        %v951 = vunpack.c.0.s8 %v950
        %v952 = vperm.slane %v948, %v951
        %v953 = vrot.slane %v943, 4
        %v954 = vsel %vm768, %v953, %v941
        %v956 = vunpack.c.l.s4 1983009808
        %v957 = vunpack.c.0.s8 %v956
        %v958 = vperm.slane %v954, %v957
        %v959 = vsel %vm768, %v946, %v935
        %v961 = vunpack.c.l.s4 1983009808
        %v962 = vunpack.c.0.s8 %v961
        %v963 = vperm.slane %v959, %v962
        %v964 = vrot.slane %v947, 4
        %v965 = vsel %vm768, %v964, %v945
        %v967 = vunpack.c.l.s4 1983009808
        %v968 = vunpack.c.0.s8 %v967
        %v969 = vperm.slane %v965, %v968
        %v970 = vrot.slane %v958, 4
        %v971 = vsel %vm768, %v970, %v952
        %v972 = vrot.slane %v952, 4
        %v973 = vsel %vm768, %v958, %v972
        %v975 = vunpack.c.l.s4 1934713408
        %v976 = vunpack.c.0.s8 %v975
        %v977 = vperm.slane %v971, %v976
        %v979 = vunpack.c.l.s4 1934713408
        %v980 = vunpack.c.0.s8 %v979
        %v981 = vperm.slane %v973, %v980
        %v982 = vrot.slane %v969, 4
        %v983 = vsel %vm768, %v982, %v963
        %v984 = vrot.slane %v963, 4
        %v985 = vsel %vm768, %v969, %v984
        %v987 = vunpack.c.l.s4 1934713408
        %v988 = vunpack.c.0.s8 %v987
        %v989 = vperm.slane %v983, %v988
        %v991 = vunpack.c.l.s4 1934713408
        %v992 = vunpack.c.0.s8 %v991
        %v993 = vperm.slane %v985, %v992
        %v994 = vrot.slane %v989, 4
        %v995 = vsel %vm768, %v994, %v977
        %v996 = vrot.slane %v977, 4
        %v997 = vsel %vm768, %v989, %v996
        %v998 = vrot.slane %v993, 4
        %v999 = vsel %vm768, %v998, %v981
        %v1000 = vrot.slane %v981, 4
        %v1001 = vsel %vm768, %v993, %v1000
        %v1002 = vpack.c.bf16 %v995, %v995
        %v1003 = vpack.c.bf16 %v997, %v997
        %v1004 = vpack.c.bf16 %v999, %v999
        %v1005 = vpack.c.bf16 %v1001, %v1001
        %1007 = vrot.lane.b32.xlu0 %v756, 96
        %v1008 = vpop.permute.xlu0 %1007
        %1010 = vrot.lane.b32.xlu0 %v756, 64
        %v1011 = vpop.permute.xlu0 %1010
        %1013 = vrot.lane.b32.xlu0 %v756, 32
        %v1014 = vpop.permute.xlu0 %1013
        %v1016 = vrot.slane %v1011, 4
        %v1017 = vsel %vm768, %v1016, %v756
        %v1018 = vrot.slane %v756, 4
        %v1019 = vsel %vm768, %v1011, %v1018
        %v1021 = vunpack.c.l.s4 1983009808
        %v1022 = vunpack.c.0.s8 %v1021
        %v1023 = vperm.slane %v1017, %v1022
        %v1025 = vunpack.c.l.s4 1983009808
        %v1026 = vunpack.c.0.s8 %v1025
        %v1027 = vperm.slane %v1019, %v1026
        %v1028 = vrot.slane %v1014, 4
        %v1029 = vsel %vm768, %v1028, %v1008
        %v1030 = vrot.slane %v1008, 4
        %v1031 = vsel %vm768, %v1014, %v1030
        %v1033 = vunpack.c.l.s4 1983009808
        %v1034 = vunpack.c.0.s8 %v1033
        %v1035 = vperm.slane %v1029, %v1034
        %v1037 = vunpack.c.l.s4 1983009808
        %v1038 = vunpack.c.0.s8 %v1037
        %v1039 = vperm.slane %v1031, %v1038
        %v1040 = vrot.slane %v1035, 4
        %v1041 = vsel %vm768, %v1040, %v1023
        %v1042 = vrot.slane %v1023, 4
        %v1043 = vsel %vm768, %v1035, %v1042
        %v1045 = vunpack.c.l.s4 1934713408
        %v1046 = vunpack.c.0.s8 %v1045
        %v1047 = vperm.slane %v1041, %v1046
        %v1049 = vunpack.c.l.s4 1934713408
        %v1050 = vunpack.c.0.s8 %v1049
        %v1051 = vperm.slane %v1043, %v1050
        %v1052 = vrot.slane %v1039, 4
        %v1053 = vsel %vm768, %v1052, %v1027
        %v1054 = vrot.slane %v1027, 4
        %v1055 = vsel %vm768, %v1039, %v1054
        %v1057 = vunpack.c.l.s4 1934713408
        %v1058 = vunpack.c.0.s8 %v1057
        %v1059 = vperm.slane %v1053, %v1058
        %v1061 = vunpack.c.l.s4 1934713408
        %v1062 = vunpack.c.0.s8 %v1061
        %v1063 = vperm.slane %v1055, %v1062
        %v1064 = vrot.slane %v1047, 4
        %v1065 = vsel %vm768, 0.0, %v1064
        %v1066 = vrot.slane %v1051, 4
        %v1067 = vsel %vm768, 0.0, %v1066
        %v1068 = vrot.slane %v1059, 4
        %v1069 = vsel %vm768, 0.0, %v1068
        %v1070 = vrot.slane %v1063, 4
        %v1071 = vsel %vm768, 0.0, %v1070
        %v1072 = vsel %vm768, %v1066, %v1047
        %v1074 = vunpack.c.l.s4 1983009808
        %v1075 = vunpack.c.0.s8 %v1074
        %v1076 = vperm.slane %v1072, %v1075
        %v1077 = vrot.slane %v1067, 4
        %v1078 = vsel %vm768, %v1077, %v1065
        %v1080 = vunpack.c.l.s4 1983009808
        %v1081 = vunpack.c.0.s8 %v1080
        %v1082 = vperm.slane %v1078, %v1081
        %v1083 = vsel %vm768, %v1070, %v1059
        %v1085 = vunpack.c.l.s4 1983009808
        %v1086 = vunpack.c.0.s8 %v1085
        %v1087 = vperm.slane %v1083, %v1086
        %v1088 = vrot.slane %v1071, 4
        %v1089 = vsel %vm768, %v1088, %v1069
        %v1091 = vunpack.c.l.s4 1983009808
        %v1092 = vunpack.c.0.s8 %v1091
        %v1093 = vperm.slane %v1089, %v1092
        %v1094 = vrot.slane %v1082, 4
        %v1095 = vsel %vm768, %v1094, %v1076
        %v1096 = vrot.slane %v1076, 4
        %v1097 = vsel %vm768, %v1082, %v1096
        %v1099 = vunpack.c.l.s4 1934713408
        %v1100 = vunpack.c.0.s8 %v1099
        %v1101 = vperm.slane %v1095, %v1100
        %v1103 = vunpack.c.l.s4 1934713408
        %v1104 = vunpack.c.0.s8 %v1103
        %v1105 = vperm.slane %v1097, %v1104
        %v1106 = vrot.slane %v1093, 4
        %v1107 = vsel %vm768, %v1106, %v1087
        %v1108 = vrot.slane %v1087, 4
        %v1109 = vsel %vm768, %v1093, %v1108
        %v1111 = vunpack.c.l.s4 1934713408
        %v1112 = vunpack.c.0.s8 %v1111
        %v1113 = vperm.slane %v1107, %v1112
        %v1115 = vunpack.c.l.s4 1934713408
        %v1116 = vunpack.c.0.s8 %v1115
        %v1117 = vperm.slane %v1109, %v1116
        %v1118 = vrot.slane %v1113, 4
        %v1119 = vsel %vm768, %v1118, %v1101
        %v1120 = vrot.slane %v1101, 4
        %v1121 = vsel %vm768, %v1113, %v1120
        %v1122 = vrot.slane %v1117, 4
        %v1123 = vsel %vm768, %v1122, %v1105
        %v1124 = vrot.slane %v1105, 4
        %v1125 = vsel %vm768, %v1117, %v1124
        %v1126 = vpack.c.bf16 %v1119, %v1119
        %v1127 = vpack.c.bf16 %v1121, %v1121
        %v1128 = vpack.c.bf16 %v1123, %v1123
        %v1129 = vpack.c.bf16 %v1125, %v1125
        %vm1130 = vcmask 261120
        %v1132 = vsel %vm1130, %v878, 0
        %v1135 = vsel %vm1130, %v1002, 0
        %1137 = vmatpush.bf16.xpose.msra.mxu0 0
        %1138 = vmatpush.bf16.xpose.msra.mxu0 0
        %1139 = vmatpush.bf16.xpose.msra.mxu0 0
        %1140 = vmatpush.bf16.xpose.msra.mxu0 0
        %1141 = vmatpush.bf16.xpose.msra.mxu0 0
        %1142 = vmatpush.bf16.xpose.msra.mxu0 0
        %1143 = vmatpush.bf16.xpose.msra.mxu0 0
        %1144 = vmatpush.bf16.xpose.msra.mxu0 %v1135
        %1145 = vmatmul.bf16.gmra.mxu0 %v1132
        %v1146 = vpop.f32.mrf.mxu0
        %v1147 = vadd.f32 0.0, %v1146
        %v1148 = vpop.f32.mrf.mxu0
        %1149 = vdwg.mxu0
        %v1151 = vsel %vm1130, %v879, 0
        %v1154 = vsel %vm1130, %v1003, 0
        %1156 = vmatpush.bf16.xpose.msra.mxu0 0
        %1157 = vmatpush.bf16.xpose.msra.mxu0 0
        %1158 = vmatpush.bf16.xpose.msra.mxu0 0
        %1159 = vmatpush.bf16.xpose.msra.mxu0 0
        %1160 = vmatpush.bf16.xpose.msra.mxu0 0
        %1161 = vmatpush.bf16.xpose.msra.mxu0 0
        %1162 = vmatpush.bf16.xpose.msra.mxu0 0
        %1163 = vmatpush.bf16.xpose.msra.mxu0 %v1154
        %1164 = vmatmul.bf16.gmra.mxu0 %v1151
        %v1165 = vpop.f32.mrf.mxu0
        %v1166 = vadd.f32 0.0, %v1165
        %v1167 = vpop.f32.mrf.mxu0
        %1168 = vdwg.mxu0
        %v1170 = vsel %vm1130, %v880, 0
        %v1173 = vsel %vm1130, %v1004, 0
        %1175 = vmatpush.bf16.xpose.msra.mxu0 0
        %1176 = vmatpush.bf16.xpose.msra.mxu0 0
        %1177 = vmatpush.bf16.xpose.msra.mxu0 0
        %1178 = vmatpush.bf16.xpose.msra.mxu0 0
        %1179 = vmatpush.bf16.xpose.msra.mxu0 0
        %1180 = vmatpush.bf16.xpose.msra.mxu0 0
        %1181 = vmatpush.bf16.xpose.msra.mxu0 0
        %1182 = vmatpush.bf16.xpose.msra.mxu0 %v1173
        %1183 = vmatmul.bf16.gmra.mxu0 %v1170
        %v1184 = vpop.f32.mrf.mxu0
        %v1185 = vadd.f32 0.0, %v1184
        %v1186 = vpop.f32.mrf.mxu0
        %1187 = vdwg.mxu0
        %v1189 = vsel %vm1130, %v881, 0
        %v1192 = vsel %vm1130, %v1005, 0
        %1194 = vmatpush.bf16.xpose.msra.mxu0 0
        %1195 = vmatpush.bf16.xpose.msra.mxu0 0
        %1196 = vmatpush.bf16.xpose.msra.mxu0 0
        %1197 = vmatpush.bf16.xpose.msra.mxu0 0
        %1198 = vmatpush.bf16.xpose.msra.mxu0 0
        %1199 = vmatpush.bf16.xpose.msra.mxu0 0
        %1200 = vmatpush.bf16.xpose.msra.mxu0 0
        %1201 = vmatpush.bf16.xpose.msra.mxu0 %v1192
        %1202 = vmatmul.bf16.gmra.mxu0 %v1189
        %v1203 = vpop.f32.mrf.mxu0
        %v1204 = vadd.f32 0.0, %v1203
        %v1205 = vpop.f32.mrf.mxu0
        %1206 = vdwg.mxu0
        %v1207 = vmul.f32 %v1147, 0.17677669
        %v1208 = vmul.f32 %v1166, 0.17677669
        %v1209 = vmul.f32 %v1185, 0.17677669
        %v1210 = vmul.f32 %v1204, 0.17677669
        %vm1211 = vcmask 64512
        %v1212 = vsel %vm1211, %v1207, -inf
        %1213 = vmax.xlane.f32.xlu0 %v1212
        %v1214 = vpop.xlane.xlu0 %1213
        %v1215 = vsel %vm1211, %v1208, -inf
        %1216 = vmax.xlane.f32.xlu0 %v1215
        %v1217 = vpop.xlane.xlu0 %1216
        %v1218 = vsel %vm1211, %v1209, -inf
        %1219 = vmax.xlane.f32.xlu0 %v1218
        %v1220 = vpop.xlane.xlu0 %1219
        %v1221 = vsel %vm1211, %v1210, -inf
        %1222 = vmax.xlane.f32.xlu0 %v1221
        %v1223 = vpop.xlane.xlu0 %1222
        %v1224 = vsub.f32 %v1207, %v1214
        %v1225 = vsub.f32 %v1208, %v1217
        %v1226 = vsub.f32 %v1209, %v1220
        %v1227 = vsub.f32 %v1210, %v1223
        %v1228 = vmul.f32 %v1224, 1.442695
        %v1229 = vpow.pop %v1228
        %v1230 = vmul.f32 %v1225, 1.442695
        %v1231 = vpow.pop %v1230
        %v1232 = vmul.f32 %v1226, 1.442695
        %v1233 = vpow.pop %v1232
        %v1234 = vmul.f32 %v1227, 1.442695
        %v1235 = vpow.pop %v1234
        %v1236 = vsel %vm1211, %v1229, 0.0
        %1237 = vadd.xlane.f32.xlu0 %v1236
        %v1238 = vpop.xlane.xlu0 %1237
        %v1239 = vsel %vm1211, %v1231, 0.0
        %1240 = vadd.xlane.f32.xlu0 %v1239
        %v1241 = vpop.xlane.xlu0 %1240
        %v1242 = vsel %vm1211, %v1233, 0.0
        %1243 = vadd.xlane.f32.xlu0 %v1242
        %v1244 = vpop.xlane.xlu0 %1243
        %v1245 = vsel %vm1211, %v1235, 0.0
        %1246 = vadd.xlane.f32.xlu0 %v1245
        %v1247 = vpop.xlane.xlu0 %1246
        %v1248 = vrcp.pop %v1238
        %v1249 = vrcp.pop %v1241
        %v1250 = vrcp.pop %v1244
        %v1251 = vrcp.pop %v1247
        %v1252 = vmul.f32 %v1229, %v1248
        %v1253 = vmul.f32 %v1231, %v1249
        %v1254 = vmul.f32 %v1233, %v1250
        %v1255 = vmul.f32 %v1235, %v1251
        %v1256 = vpack.c.bf16 %v1252, %v1252
        %v1257 = vpack.c.bf16 %v1253, %v1253
        %v1258 = vpack.c.bf16 %v1254, %v1254
        %v1259 = vpack.c.bf16 %v1255, %v1255
        %v1261 = vsel %vm1211, %v1256, 0
        %vm1263 = vcmask 1043456
        %v1265 = vsel %vm1263, %v1126, 0
        %1267 = vmatpush.bf16.msra.mxu0 0
        %1268 = vmatpush.bf16.msra.mxu0 0
        %1269 = vmatpush.bf16.msra.mxu0 0
        %1270 = vmatpush.bf16.msra.mxu0 0
        %1271 = vmatpush.bf16.msra.mxu0 0
        %1272 = vmatpush.bf16.msra.mxu0 0
        %1273 = vmatpush.bf16.msra.mxu0 0
        %1274 = vmatpush.bf16.msra.mxu0 %v1265
        %1275 = vmatmul.bf16.gmra.mxu0 %v1261
        %v1276 = vpop.f32.mrf.mxu0
        %v1277 = vadd.f32 0.0, %v1276
        %v1278 = vpop.f32.mrf.mxu0
        %1279 = vdwg.mxu0
        %v1281 = vsel %vm1211, %v1257, 0
        %v1284 = vsel %vm1263, %v1127, 0
        %1286 = vmatpush.bf16.msra.mxu0 0
        %1287 = vmatpush.bf16.msra.mxu0 0
        %1288 = vmatpush.bf16.msra.mxu0 0
        %1289 = vmatpush.bf16.msra.mxu0 0
        %1290 = vmatpush.bf16.msra.mxu0 0
        %1291 = vmatpush.bf16.msra.mxu0 0
        %1292 = vmatpush.bf16.msra.mxu0 0
        %1293 = vmatpush.bf16.msra.mxu0 %v1284
        %1294 = vmatmul.bf16.gmra.mxu0 %v1281
        %v1295 = vpop.f32.mrf.mxu0
        %v1296 = vadd.f32 0.0, %v1295
        %v1297 = vpop.f32.mrf.mxu0
        %1298 = vdwg.mxu0
        %v1300 = vsel %vm1211, %v1258, 0
        %v1303 = vsel %vm1263, %v1128, 0
        %1305 = vmatpush.bf16.msra.mxu0 0
        %1306 = vmatpush.bf16.msra.mxu0 0
        %1307 = vmatpush.bf16.msra.mxu0 0
        %1308 = vmatpush.bf16.msra.mxu0 0
        %1309 = vmatpush.bf16.msra.mxu0 0
        %1310 = vmatpush.bf16.msra.mxu0 0
        %1311 = vmatpush.bf16.msra.mxu0 0
        %1312 = vmatpush.bf16.msra.mxu0 %v1303
        %1313 = vmatmul.bf16.gmra.mxu0 %v1300
        %v1314 = vpop.f32.mrf.mxu0
        %v1315 = vadd.f32 0.0, %v1314
        %v1316 = vpop.f32.mrf.mxu0
        %1317 = vdwg.mxu0
        %v1319 = vsel %vm1211, %v1259, 0
        %v1322 = vsel %vm1263, %v1129, 0
        %1324 = vmatpush.bf16.msra.mxu0 0
        %1325 = vmatpush.bf16.msra.mxu0 0
        %1326 = vmatpush.bf16.msra.mxu0 0
        %1327 = vmatpush.bf16.msra.mxu0 0
        %1328 = vmatpush.bf16.msra.mxu0 0
        %1329 = vmatpush.bf16.msra.mxu0 0
        %1330 = vmatpush.bf16.msra.mxu0 0
        %1331 = vmatpush.bf16.msra.mxu0 %v1322
        %1332 = vmatmul.bf16.gmra.mxu0 %v1319
        %v1333 = vpop.f32.mrf.mxu0
        %v1334 = vadd.f32 0.0, %v1333
        %v1335 = vpop.f32.mrf.mxu0
        %1336 = vdwg.mxu0
        %v1337 = vrot.slane %v1315, 4
        %v1338 = vsel %vm768, %v1337, %v1277
        %v1339 = vrot.slane %v1277, 4
        %v1340 = vsel %vm768, %v1315, %v1339
        %v1342 = vunpack.c.l.s4 1983009808
        %v1343 = vunpack.c.0.s8 %v1342
        %v1344 = vperm.slane %v1338, %v1343
        %v1346 = vunpack.c.l.s4 1983009808
        %v1347 = vunpack.c.0.s8 %v1346
        %v1348 = vperm.slane %v1340, %v1347
        %v1349 = vrot.slane %v1334, 4
        %v1350 = vsel %vm768, %v1349, %v1296
        %v1351 = vrot.slane %v1296, 4
        %v1352 = vsel %vm768, %v1334, %v1351
        %v1354 = vunpack.c.l.s4 1983009808
        %v1355 = vunpack.c.0.s8 %v1354
        %v1356 = vperm.slane %v1350, %v1355
        %v1358 = vunpack.c.l.s4 1983009808
        %v1359 = vunpack.c.0.s8 %v1358
        %v1360 = vperm.slane %v1352, %v1359
        %v1361 = vrot.slane %v1356, 4
        %v1362 = vsel %vm768, %v1361, %v1344
        %v1363 = vrot.slane %v1344, 4
        %v1364 = vsel %vm768, %v1356, %v1363
        %v1366 = vunpack.c.l.s4 1934713408
        %v1367 = vunpack.c.0.s8 %v1366
        %v1368 = vperm.slane %v1362, %v1367
        %v1370 = vunpack.c.l.s4 1934713408
        %v1371 = vunpack.c.0.s8 %v1370
        %v1372 = vperm.slane %v1364, %v1371
        %v1373 = vrot.slane %v1360, 4
        %v1374 = vsel %vm768, %v1373, %v1348
        %v1375 = vrot.slane %v1348, 4
        %v1376 = vsel %vm768, %v1360, %v1375
        %v1378 = vunpack.c.l.s4 1934713408
        %v1379 = vunpack.c.0.s8 %v1378
        %v1380 = vperm.slane %v1374, %v1379
        %v1382 = vunpack.c.l.s4 1934713408
        %v1383 = vunpack.c.0.s8 %v1382
        %v1384 = vperm.slane %v1376, %v1383
        %v1385 = vrot.slane %v1368, 4
        %v1386 = vsel %vm768, 0.0, %v1385
        %v1387 = vrot.slane %v1372, 4
        %v1388 = vsel %vm768, 0.0, %v1387
        %v1389 = vrot.slane %v1380, 4
        %v1390 = vsel %vm768, 0.0, %v1389
        %v1391 = vrot.slane %v1384, 4
        %v1392 = vsel %vm768, 0.0, %v1391
        %v1393 = vsel %vm768, %v1387, %v1368
        %v1395 = vunpack.c.l.s4 1983009808
        %v1396 = vunpack.c.0.s8 %v1395
        %v1397 = vperm.slane %v1393, %v1396
        %v1398 = vrot.slane %v1388, 4
        %v1399 = vsel %vm768, %v1398, %v1386
        %v1401 = vunpack.c.l.s4 1983009808
        %v1402 = vunpack.c.0.s8 %v1401
        %v1403 = vperm.slane %v1399, %v1402
        %v1404 = vsel %vm768, %v1391, %v1380
        %v1406 = vunpack.c.l.s4 1983009808
        %v1407 = vunpack.c.0.s8 %v1406
        %v1408 = vperm.slane %v1404, %v1407
        %v1409 = vrot.slane %v1392, 4
        %v1410 = vsel %vm768, %v1409, %v1390
        %v1412 = vunpack.c.l.s4 1983009808
        %v1413 = vunpack.c.0.s8 %v1412
        %v1414 = vperm.slane %v1410, %v1413
        %v1415 = vrot.slane %v1403, 4
        %v1416 = vsel %vm768, %v1415, %v1397
        %v1417 = vrot.slane %v1397, 4
        %v1418 = vsel %vm768, %v1403, %v1417
        %v1420 = vunpack.c.l.s4 1934713408
        %v1421 = vunpack.c.0.s8 %v1420
        %v1422 = vperm.slane %v1416, %v1421
        %v1424 = vunpack.c.l.s4 1934713408
        %v1425 = vunpack.c.0.s8 %v1424
        %v1426 = vperm.slane %v1418, %v1425
        %v1427 = vrot.slane %v1414, 4
        %v1428 = vsel %vm768, %v1427, %v1408
        %v1429 = vrot.slane %v1408, 4
        %v1430 = vsel %vm768, %v1414, %v1429
        %v1432 = vunpack.c.l.s4 1934713408
        %v1433 = vunpack.c.0.s8 %v1432
        %v1434 = vperm.slane %v1428, %v1433
        %v1436 = vunpack.c.l.s4 1934713408
        %v1437 = vunpack.c.0.s8 %v1436
        %v1438 = vperm.slane %v1430, %v1437
        %v1439 = vrot.slane %v1434, 4
        %v1440 = vsel %vm768, %v1439, %v1422
        %v1441 = vrot.slane %v1422, 4
        %v1442 = vsel %vm768, %v1434, %v1441
        %v1443 = vrot.slane %v1438, 4
        %v1444 = vsel %vm768, %v1443, %v1426
        %v1445 = vrot.slane %v1426, 4
        %v1446 = vsel %vm768, %v1438, %v1445
        %1448 = vrot.lane.b32.xlu0 %v1442, 32
        %v1449 = vpop.permute.xlu0 %1448
        %1452 = vrot.lane.b32.xlu0 %v1444, 64
        %v1453 = vpop.permute.xlu0 %1452
        %1456 = vrot.lane.b32.xlu0 %v1446, 96
        %v1457 = vpop.permute.xlu0 %1456
        %v1459 = vsel %vm1130, %v1440, %v1449
        %vm1460 = vcmask 523264
        %v1461 = vsel %vm1460, %v1459, %v1453
        %vm1462 = vcmask 785408
        %v1463 = vsel %vm1462, %v1461, %v1457
        %v1464 = vpack.c.bf16 %v1463, %v1463
        %v1465 = vld [vmem:[#allocation10] sm:$0xf]
        %v1466 = vld [vmem:[#allocation10 + $0x4] sm:$0xf]
        %v1467 = vld [vmem:[#allocation10 + $0x8] sm:$0xf]
        %v1468 = vld [vmem:[#allocation10 + $0xc] sm:$0xf]
        %v1469 = vld [vmem:[#allocation10 + $0x10] sm:$0xf]
        %v1470 = vld [vmem:[#allocation10 + $0x14] sm:$0xf]
        %v1471 = vld [vmem:[#allocation10 + $0x18] sm:$0xf]
        %v1472 = vld [vmem:[#allocation10 + $0x1c] sm:$0xf]
        %v1473 = vld [vmem:[#allocation10 + $0x20] sm:$0xf]
        %v1474 = vld [vmem:[#allocation10 + $0x24] sm:$0xf]
        %v1475 = vld [vmem:[#allocation10 + $0x28] sm:$0xf]
        %v1476 = vld [vmem:[#allocation10 + $0x2c] sm:$0xf]
        %v1477 = vld [vmem:[#allocation10 + $0x30] sm:$0xf]
        %v1478 = vld [vmem:[#allocation10 + $0x34] sm:$0xf]
        %v1479 = vld [vmem:[#allocation10 + $0x38] sm:$0xf]
        %v1480 = vld [vmem:[#allocation10 + $0x3c] sm:$0xf]
        %v1481 = vperm.slane %v511, 0
        %v1498 = vunpack.c.l.b16 %v1465
        %v1499 = vunpack.c.l.b16 %v1466
        %v1500 = vunpack.c.l.b16 %v1467
        %v1501 = vunpack.c.l.b16 %v1468
        %v1502 = vunpack.c.l.b16 %v1469
        %v1503 = vunpack.c.l.b16 %v1470
        %v1504 = vunpack.c.l.b16 %v1471
        %v1505 = vunpack.c.l.b16 %v1472
        %v1506 = vunpack.c.l.b16 %v1473
        %v1507 = vunpack.c.l.b16 %v1474
        %v1508 = vunpack.c.l.b16 %v1475
        %v1509 = vunpack.c.l.b16 %v1476
        %v1510 = vunpack.c.l.b16 %v1477
        %v1511 = vunpack.c.l.b16 %v1478
        %v1512 = vunpack.c.l.b16 %v1479
        %v1513 = vunpack.c.l.b16 %v1480
        %v1514 = vpack.c.b16 %v1499, %v1498
        %v1515 = vpack.c.b16 %v1501, %v1500
        %v1516 = vpack.c.b16 %v1503, %v1502
        %v1517 = vpack.c.b16 %v1505, %v1504
        %v1518 = vpack.c.b16 %v1507, %v1506
        %v1519 = vpack.c.b16 %v1509, %v1508
        %v1520 = vpack.c.b16 %v1511, %v1510
        %v1521 = vpack.c.b16 %v1513, %v1512
        %1530 = vmatpush.bf16.msra.mxu0 %v1521
        %1531 = vmatpush.bf16.msra.mxu0 %v1520
        %1532 = vmatpush.bf16.msra.mxu0 %v1519
        %1533 = vmatpush.bf16.msra.mxu0 %v1518
        %1534 = vmatpush.bf16.msra.mxu0 %v1517
        %1535 = vmatpush.bf16.msra.mxu0 %v1516
        %1536 = vmatpush.bf16.msra.mxu0 %v1515
        %1537 = vmatpush.bf16.msra.mxu0 %v1514
        %1538 = vmatmul.bf16.gmra.mxu0 %v1464
        %v1539 = vpop.f32.mrf.mxu0
        %v1540 = vadd.f32 %v1481, %v1539
        %v1541 = vpop.f32.mrf.mxu0
        %1542 = vdwg.mxu0
        %v1543 = vadd.f32 %v506, %v1540
        %1544 = vadd.xlane.f32.xlu0 %v1543
        %v1545 = vpop.xlane.xlu0 %1544
        %v1546 = vmul.f32 %v1545, %v525
        %v1547 = vsub.f32 %v1543, %v1546
        %v1548 = vmul.f32 %v1547, %v1547
        %1549 = vadd.xlane.f32.xlu0 %v1548
        %v1550 = vpop.xlane.xlu0 %1549
        %v1551 = vmul.f32 %v1550, 0.007874016
        %v1552 = vrsqrt.pop %v1551
        %v1553 = vmul.f32 %v1552, %v1551
        %v1554 = vmul.f32 %v1553, %v1552
        %v1555 = vmul.f32 0.5, %v1554
        %v1556 = vsub.f32 1.5, %v1555
        %v1557 = vmul.f32 %v1552, %v1556
        %v1558 = vmul.f32 %v1551, %v1557
        %vm1559 = vcmp.eq.f32.partialorder %v1551, inf
        %v1560 = vsel %vm1559, %v1551, %v1558
        %vm1561 = vcmp.eq.f32.partialorder %v1551, 0.0
        %v1562 = vand.u32 %v1551, 2147483648
        %v1563 = vsel %vm1561, %v1562, %v1560
        %v1564 = vadd.f32 %v1563, 1e-06
        %v1565 = vrcp.pop %v1564
        %v1566 = vmul.f32 %v1547, %v1565
        %v1567 = vperm.slane %v514, 0
        %v1568 = vmul.f32 %v1567, %v1566
        %v1569 = vperm.slane %v515, 0
        %v1570 = vadd.f32 %v1568, %v1569
        %v1571 = vpack.c.bf16 %v1570, %v1570
        %v1572 = vld [vmem:[#allocation11] sm:$0xff]
        %v1573 = vld [vmem:[#allocation11 + $0x8] sm:$0xff]
        %v1574 = vld [vmem:[#allocation11 + $0x10] sm:$0xff]
        %v1575 = vld [vmem:[#allocation11 + $0x18] sm:$0xff]
        %v1576 = vld [vmem:[#allocation11 + $0x20] sm:$0xff]
        %v1577 = vld [vmem:[#allocation11 + $0x28] sm:$0xff]
        %v1578 = vld [vmem:[#allocation11 + $0x30] sm:$0xff]
        %v1579 = vld [vmem:[#allocation11 + $0x38] sm:$0xff]
        %v1580 = vld [vmem:[#allocation11 + $0x40] sm:$0xff]
        %v1581 = vld [vmem:[#allocation11 + $0x48] sm:$0xff]
        %v1582 = vld [vmem:[#allocation11 + $0x50] sm:$0xff]
        %v1583 = vld [vmem:[#allocation11 + $0x58] sm:$0xff]
        %v1584 = vld [vmem:[#allocation11 + $0x60] sm:$0xff]
        %v1585 = vld [vmem:[#allocation11 + $0x68] sm:$0xff]
        %v1586 = vld [vmem:[#allocation11 + $0x70] sm:$0xff]
        %v1587 = vld [vmem:[#allocation11 + $0x78] sm:$0xff]
        %v1588 = vld [vmem:[%s8] sm:$0x3]
        %v1590 = vperm.slane %v1588, 0
        %v1591 = vperm.slane %v1588, 1
        %v1610 = vunpack.c.l.b16 %v1572
        %v1611 = vunpack.c.h.b16 %v1572
        %v1612 = vunpack.c.l.b16 %v1573
        %v1613 = vunpack.c.h.b16 %v1573
        %v1614 = vunpack.c.l.b16 %v1574
        %v1615 = vunpack.c.h.b16 %v1574
        %v1616 = vunpack.c.l.b16 %v1575
        %v1617 = vunpack.c.h.b16 %v1575
        %v1618 = vunpack.c.l.b16 %v1576
        %v1619 = vunpack.c.h.b16 %v1576
        %v1620 = vunpack.c.l.b16 %v1577
        %v1621 = vunpack.c.h.b16 %v1577
        %v1622 = vunpack.c.l.b16 %v1578
        %v1623 = vunpack.c.h.b16 %v1578
        %v1624 = vunpack.c.l.b16 %v1579
        %v1625 = vunpack.c.h.b16 %v1579
        %v1626 = vunpack.c.l.b16 %v1580
        %v1627 = vunpack.c.h.b16 %v1580
        %v1628 = vunpack.c.l.b16 %v1581
        %v1629 = vunpack.c.h.b16 %v1581
        %v1630 = vunpack.c.l.b16 %v1582
        %v1631 = vunpack.c.h.b16 %v1582
        %v1632 = vunpack.c.l.b16 %v1583
        %v1633 = vunpack.c.h.b16 %v1583
        %v1634 = vunpack.c.l.b16 %v1584
        %v1635 = vunpack.c.h.b16 %v1584
        %v1636 = vunpack.c.l.b16 %v1585
        %v1637 = vunpack.c.h.b16 %v1585
        %v1638 = vunpack.c.l.b16 %v1586
        %v1639 = vunpack.c.h.b16 %v1586
        %v1640 = vunpack.c.l.b16 %v1587
        %v1641 = vunpack.c.h.b16 %v1587
        %v1642 = vpack.c.b16 %v1612, %v1610
        %v1643 = vpack.c.b16 %v1613, %v1611
        %v1644 = vpack.c.b16 %v1616, %v1614
        %v1645 = vpack.c.b16 %v1617, %v1615
        %v1646 = vpack.c.b16 %v1620, %v1618
        %v1647 = vpack.c.b16 %v1621, %v1619
        %v1648 = vpack.c.b16 %v1624, %v1622
        %v1649 = vpack.c.b16 %v1625, %v1623
        %v1650 = vpack.c.b16 %v1628, %v1626
        %v1651 = vpack.c.b16 %v1629, %v1627
        %v1652 = vpack.c.b16 %v1632, %v1630
        %v1653 = vpack.c.b16 %v1633, %v1631
        %v1654 = vpack.c.b16 %v1636, %v1634
        %v1655 = vpack.c.b16 %v1637, %v1635
        %v1656 = vpack.c.b16 %v1640, %v1638
        %v1657 = vpack.c.b16 %v1641, %v1639
        %1674 = vmatpush.bf16.msra.mxu0 %v1656
        %1675 = vmatpush.bf16.msra.mxu0 %v1654
        %1676 = vmatpush.bf16.msra.mxu0 %v1652
        %1677 = vmatpush.bf16.msra.mxu0 %v1650
        %1678 = vmatpush.bf16.msra.mxu0 %v1648
        %1679 = vmatpush.bf16.msra.mxu0 %v1646
        %1680 = vmatpush.bf16.msra.mxu0 %v1644
        %1681 = vmatpush.bf16.msra.mxu0 %v1642
        %1682 = vmatmul.bf16.gmra.mxu0 %v1571
        %v1683 = vpop.f32.mrf.mxu0
        %v1684 = vadd.f32 %v1590, %v1683
        %v1685 = vpop.f32.mrf.mxu0
        %1686 = vdwg.mxu0
        %1687 = vmatpush.bf16.msra.mxu0 %v1657
        %1688 = vmatpush.bf16.msra.mxu0 %v1655
        %1689 = vmatpush.bf16.msra.mxu0 %v1653
        %1690 = vmatpush.bf16.msra.mxu0 %v1651
        %1691 = vmatpush.bf16.msra.mxu0 %v1649
        %1692 = vmatpush.bf16.msra.mxu0 %v1647
        %1693 = vmatpush.bf16.msra.mxu0 %v1645
        %1694 = vmatpush.bf16.msra.mxu0 %v1643
        %1695 = vmatmul.bf16.gmra.mxu0 %v1571
        %v1696 = vpop.f32.mrf.mxu0
        %v1697 = vadd.f32 %v1591, %v1696
        %v1698 = vpop.f32.mrf.mxu0
        %1699 = vdwg.mxu0
        %v1700 = vmax.f32 %v1684, 0.0
        %v1701 = vmax.f32 %v1697, 0.0
        %v1702 = vpack.c.bf16 %v1700, %v1700
        %v1703 = vpack.c.bf16 %v1701, %v1701
        %v1704 = vld [vmem:[#allocation13] sm:$0xf]
        %v1705 = vld [vmem:[#allocation13 + $0x4] sm:$0xf]
        %v1706 = vld [vmem:[#allocation13 + $0x8] sm:$0xf]
        %v1707 = vld [vmem:[#allocation13 + $0xc] sm:$0xf]
        %v1708 = vld [vmem:[#allocation13 + $0x10] sm:$0xf]
        %v1709 = vld [vmem:[#allocation13 + $0x14] sm:$0xf]
        %v1710 = vld [vmem:[#allocation13 + $0x18] sm:$0xf]
        %v1711 = vld [vmem:[#allocation13 + $0x1c] sm:$0xf]
        %v1712 = vld [vmem:[#allocation13 + $0x20] sm:$0xf]
        %v1713 = vld [vmem:[#allocation13 + $0x24] sm:$0xf]
        %v1714 = vld [vmem:[#allocation13 + $0x28] sm:$0xf]
        %v1715 = vld [vmem:[#allocation13 + $0x2c] sm:$0xf]
        %v1716 = vld [vmem:[#allocation13 + $0x30] sm:$0xf]
        %v1717 = vld [vmem:[#allocation13 + $0x34] sm:$0xf]
        %v1718 = vld [vmem:[#allocation13 + $0x38] sm:$0xf]
        %v1719 = vld [vmem:[#allocation13 + $0x3c] sm:$0xf]
        %v1720 = vld [vmem:[#allocation13 + $0x40] sm:$0xf]
        %v1721 = vld [vmem:[#allocation13 + $0x44] sm:$0xf]
        %v1722 = vld [vmem:[#allocation13 + $0x48] sm:$0xf]
        %v1723 = vld [vmem:[#allocation13 + $0x4c] sm:$0xf]
        %v1724 = vld [vmem:[#allocation13 + $0x50] sm:$0xf]
        %v1725 = vld [vmem:[#allocation13 + $0x54] sm:$0xf]
        %v1726 = vld [vmem:[#allocation13 + $0x58] sm:$0xf]
        %v1727 = vld [vmem:[#allocation13 + $0x5c] sm:$0xf]
        %v1728 = vld [vmem:[#allocation13 + $0x60] sm:$0xf]
        %v1729 = vld [vmem:[#allocation13 + $0x64] sm:$0xf]
        %v1730 = vld [vmem:[#allocation13 + $0x68] sm:$0xf]
        %v1731 = vld [vmem:[#allocation13 + $0x6c] sm:$0xf]
        %v1732 = vld [vmem:[#allocation13 + $0x70] sm:$0xf]
        %v1733 = vld [vmem:[#allocation13 + $0x74] sm:$0xf]
        %v1734 = vld [vmem:[#allocation13 + $0x78] sm:$0xf]
        %v1735 = vld [vmem:[#allocation13 + $0x7c] sm:$0xf]
        %v1736 = vperm.slane %v516, 0
        %v1769 = vunpack.c.l.b16 %v1704
        %v1770 = vunpack.c.l.b16 %v1705
        %v1771 = vunpack.c.l.b16 %v1706
        %v1772 = vunpack.c.l.b16 %v1707
        %v1773 = vunpack.c.l.b16 %v1708
        %v1774 = vunpack.c.l.b16 %v1709
        %v1775 = vunpack.c.l.b16 %v1710
        %v1776 = vunpack.c.l.b16 %v1711
        %v1777 = vunpack.c.l.b16 %v1712
        %v1778 = vunpack.c.l.b16 %v1713
        %v1779 = vunpack.c.l.b16 %v1714
        %v1780 = vunpack.c.l.b16 %v1715
        %v1781 = vunpack.c.l.b16 %v1716
        %v1782 = vunpack.c.l.b16 %v1717
        %v1783 = vunpack.c.l.b16 %v1718
        %v1784 = vunpack.c.l.b16 %v1719
        %v1785 = vunpack.c.l.b16 %v1720
        %v1786 = vunpack.c.l.b16 %v1721
        %v1787 = vunpack.c.l.b16 %v1722
        %v1788 = vunpack.c.l.b16 %v1723
        %v1789 = vunpack.c.l.b16 %v1724
        %v1790 = vunpack.c.l.b16 %v1725
        %v1791 = vunpack.c.l.b16 %v1726
        %v1792 = vunpack.c.l.b16 %v1727
        %v1793 = vunpack.c.l.b16 %v1728
        %v1794 = vunpack.c.l.b16 %v1729
        %v1795 = vunpack.c.l.b16 %v1730
        %v1796 = vunpack.c.l.b16 %v1731
        %v1797 = vunpack.c.l.b16 %v1732
        %v1798 = vunpack.c.l.b16 %v1733
        %v1799 = vunpack.c.l.b16 %v1734
        %v1800 = vunpack.c.l.b16 %v1735
        %v1801 = vpack.c.b16 %v1770, %v1769
        %v1802 = vpack.c.b16 %v1772, %v1771
        %v1803 = vpack.c.b16 %v1774, %v1773
        %v1804 = vpack.c.b16 %v1776, %v1775
        %v1805 = vpack.c.b16 %v1778, %v1777
        %v1806 = vpack.c.b16 %v1780, %v1779
        %v1807 = vpack.c.b16 %v1782, %v1781
        %v1808 = vpack.c.b16 %v1784, %v1783
        %v1809 = vpack.c.b16 %v1786, %v1785
        %v1810 = vpack.c.b16 %v1788, %v1787
        %v1811 = vpack.c.b16 %v1790, %v1789
        %v1812 = vpack.c.b16 %v1792, %v1791
        %v1813 = vpack.c.b16 %v1794, %v1793
        %v1814 = vpack.c.b16 %v1796, %v1795
        %v1815 = vpack.c.b16 %v1798, %v1797
        %v1816 = vpack.c.b16 %v1800, %v1799
        %1833 = vmatpush.bf16.msra.mxu0 %v1808
        %1834 = vmatpush.bf16.msra.mxu0 %v1807
        %1835 = vmatpush.bf16.msra.mxu0 %v1806
        %1836 = vmatpush.bf16.msra.mxu0 %v1805
        %1837 = vmatpush.bf16.msra.mxu0 %v1804
        %1838 = vmatpush.bf16.msra.mxu0 %v1803
        %1839 = vmatpush.bf16.msra.mxu0 %v1802
        %1840 = vmatpush.bf16.msra.mxu0 %v1801
        %1841 = vmatmul.bf16.gmra.mxu0 %v1702
        %v1842 = vpop.f32.mrf.mxu0
        %v1843 = vadd.f32 %v1736, %v1842
        %v1844 = vpop.f32.mrf.mxu0
        %1845 = vdwg.mxu0
        %1846 = vmatpush.bf16.msra.mxu0 %v1816
        %1847 = vmatpush.bf16.msra.mxu0 %v1815
        %1848 = vmatpush.bf16.msra.mxu0 %v1814
        %1849 = vmatpush.bf16.msra.mxu0 %v1813
        %1850 = vmatpush.bf16.msra.mxu0 %v1812
        %1851 = vmatpush.bf16.msra.mxu0 %v1811
        %1852 = vmatpush.bf16.msra.mxu0 %v1810
        %1853 = vmatpush.bf16.msra.mxu0 %v1809
        %1854 = vmatmul.bf16.gmra.mxu0 %v1703
        %v1855 = vpop.f32.mrf.mxu0
        %v1856 = vadd.f32 %v1843, %v1855
        %v1857 = vpop.f32.mrf.mxu0
        %1858 = vdwg.mxu0
        %v1859 = vadd.f32 %v1543, %v1856
        %1860 = vst [vmem:[%s504] sm:$0xff] %v1859
        %s1861 = sand.u32 %s255, 1
        %s1862 = scalar_lea.sflag [#allocation4], %s1861
        %s1863 = sand.u32 %s255, 1
        %s1864 = smul.addr %s1863, 8
        %s1865 = scalar_lea.vmem [#allocation16], %s1864
        // Predicated region
        $region89: #{tpu_custom_call.1} parent=55 // pred_check
          %p1866 = pneg %p265
        $region90: #{tpu_custom_call.1} parent=55 // pred_check_branch
          %1868 = sbr.rel (%p1866) target = $region92
        $region91: #{tpu_custom_call.1} parent=55 // pred_region
          %1870 = vsyncadd %s1862, 0
          %s1871 = sadd.s32 %s37, %s36
          %s1872 = smul.addr %s1871, 8
          %s1873 = scalar_lea.hbm %s9, %s1872
          %s1875 = sshll.u32 %s1865, 4
          %s1876 = int_to_ptr.vmem [resolvable:$true] %s1875
          %s1877 = sshll.u32 %s1873, 4
          %s1878 = int_to_ptr.hbm [resolvable:$true] %s1877
          %1880 = dma.vmem_to_hbm [thread:$0]  %s1876, 128, %s1878, %s1862
        $region92: #{tpu_custom_call.1} parent=55 // pred_fallthru
          _
      $region56: #{tpu_custom_call.1} parent=5 // pred_fallthru
        _
      %p1881 = scmp.le.s32.totalorder 2, %s27
      // Predicated region
      $region93: #{tpu_custom_call.1} parent=5 // pred_check
        %p1882 = pneg %p1881
      $region94: #{tpu_custom_call.1} parent=5 // pred_check_branch
        %1884 = sbr.rel (%p1882) target = $region96
      $region95: #{tpu_custom_call.1} parent=5 // pred_region
        %s1885 = ssub.s32 %s27, 2
        // Predicated region
        $region97: #{tpu_custom_call.1} parent=95 // pred_check
          %p1886 = pneg %p271
        $region98: #{tpu_custom_call.1} parent=95 // pred_check_branch
          %1888 = sbr.rel (%p1886) target = $region100
        $region99: #{tpu_custom_call.1} parent=95 // pred_region
          %s1889 = sand.u32 %s256, 1
          %s1890 = scalar_lea.sflag [#allocation4], %s1889
          %s1891 = sand.u32 %s256, 1
          %s1892 = smul.addr %s1891, 8
          %s1893 = scalar_lea.vmem [#allocation16], %s1892
          %1895 = dma.done %s1890, 128
        $region100: #{tpu_custom_call.1} parent=95 // pred_fallthru
          _
      $region96: #{tpu_custom_call.1} parent=5 // pred_fallthru
        _
    $region6: #{tpu_custom_call.1} parent=1 // loop_footer
      %s31 = sadd.s32 1, %s27
    $region7: #{tpu_custom_call.1} parent=1 // loop_footer_branch
      %26 = sbr.rel target = $region3
    $region8: #{tpu_custom_call.1} parent=1 // loop_exit
      _
    %1896 = vsyncpa [#allocation3], 1
    %s1897 = scalar_lea.sflag [#allocation3], 1
    %1898 = vsyncpa %s1897, 1
    %1899 = vsyncpa [#allocation6], 1
    %s1900 = scalar_lea.sflag [#allocation6], 1
    %1901 = vsyncpa %s1900, 1
    %1902 = vsyncpa [#allocation9], 1
    %1903 = vsyncpa [#allocation12], 1
    %1904 = vsyncpa [#allocation15], 1
    %1905 = vsyncpa [#allocation4], 1
    %s1906 = scalar_lea.sflag [#allocation4], 1
    %1907 = vsyncpa %s1906, 1

</llo_original>
